<compile_context>
chip_gen: v7x
topology: tpu7x:2x2x1
jax: 0.10.0
libtpu: 0.0.40
codegen_flags: <defaults>
</compile_context>

<pallas_src>
import math

import jax
import jax.numpy as jnp
from jax import lax
from jax.experimental import pallas as pl
from jax.experimental.pallas import tpu as pltpu


_DB_SCALE = 10.0 / math.log(10.0)   # 10*log10(u) - 10*log10(z) = _DB_SCALE*ln(u/z)


def _learning_model_kernel(x_ref, wc_ref, ws_ref, sz_ref, su_ref, o_ref):
    # x_ref : [RT, L]    packed phases; each F-lane segment = one batch element
    #                    (first M lanes = state phases, next M = action phases)
    # wc_ref: [L, 8*D]   block-diagonal cos-weights (D copies of [F, 8])
    # ws_ref: [L, 8*D]   block-diagonal sin-weights
    # sz_ref: [8*D, D]   0/1 selector: sum of the 4 squared state comps / segment
    # su_ref: [8*D, D]   0/1 selector: sum of the 4 squared action comps / segment
    # o_ref : [RT, D]    10*log10(u/z) per packed batch element
    hp = lax.Precision.HIGHEST  # exact-f32 MXU passes; 1e-4 dB tolerance requires it
    x = x_ref[...]
    c = jnp.cos(x)              # lane-dense transcendentals (the dominant cost)
    s = jnp.sin(x)
    # All beamforming components (zr0, zi0, zr1, zi1) for state & action of every
    # packed batch element in one shot on the MXU.
    z = (jnp.dot(c, wc_ref[...], preferred_element_type=jnp.float32, precision=hp)
         + jnp.dot(s, ws_ref[...], preferred_element_type=jnp.float32, precision=hp))
    q = z * z                                                        # [RT, 8*D]
    z_pow = jnp.dot(q, sz_ref[...], preferred_element_type=jnp.float32, precision=hp)
    u_pow = jnp.dot(q, su_ref[...], preferred_element_type=jnp.float32, precision=hp)
    # 1/sqrt(M) and the mean's /2 cancel exactly in the ratio -> dropped upstream.
    o_ref[...] = jnp.float32(_DB_SCALE) * jnp.log(u_pow / z_pow)


def _round_up(x, m):
    return (x + m - 1) // m * m


def _cdiv(a, b):
    return (a + b - 1) // b


def _pick_row_tiling(rows, rt_max=2048):
    """Pick (steps, rows_per_step, padded_rows) with steps*rows_per_step ==
    padded_rows >= rows and rows_per_step either a multiple of 8 or the full
    (padded) row count.  Prefers exact tilings (no padding copy) and >=2 steps
    for non-trivial sizes so v7x's two TensorCores both get work."""
    g_min = _cdiv(rows, rt_max)
    if g_min == 1 and rows >= 1024:
        g_min = 2                       # megacore: give v7x >= 2 parallel steps
    if g_min == 1:
        return 1, rows, rows            # single whole-array block (always legal)
    for g in range(g_min, g_min + 64):  # exact tiling -> zero padding copy
        if rows % g == 0 and (rows // g) % 8 == 0:
            return g, rows // g, rows
    g = g_min if g_min % 2 == 0 else g_min + 1
    rt = _round_up(_cdiv(rows, g), 8)
    return g, rt, g * rt


def learning_model_forward(state_action_pair, h_r, h_i, *, row_tile_max=2048):
    """state_action_pair: [B, 2*M] float32 phases, h_r/h_i: [M, 2] -> [B, 1] dB."""
    B, two_m = state_action_pair.shape
    M = two_m // 2
    assert two_m == 2 * M and h_r.shape == (M, 2) and h_i.shape == (M, 2)

    x = state_action_pair.astype(jnp.float32)
    hr = h_r.astype(jnp.float32)
    hi = h_i.astype(jnp.float32)

    # ---- packing geometry: D batch elements per lane-dense row of L lanes ----
    if two_m <= 128:
        F = 1 << (two_m - 1).bit_length()     # next pow2 >= 2M (divides 128)
    else:
        F = _round_up(two_m, 128)             # whole multiples of 128 lanes
    D = max(1, 128 // F)
    L = D * F

    # ---- per-segment weights (tiny, built once in the wrapper) ----
    # Columns: (zr col0, zi col0, zr col1, zi col1) with z_r = cos@Hr + sin@Hi,
    #          z_i = sin@Hr - cos@Hi.  Rows [0,M) = state phases, [M,2M) = action.
    w_c = jnp.stack([hr[:, 0], -hi[:, 0], hr[:, 1], -hi[:, 1]], axis=1)   # [M, 4]
    w_s = jnp.stack([hi[:, 0],  hr[:, 0], hi[:, 1],  hr[:, 1]], axis=1)   # [M, 4]
    wc_seg = (jnp.zeros((F, 8), jnp.float32)
              .at[:M, 0:4].set(w_c).at[M:two_m, 4:8].set(w_c))
    ws_seg = (jnp.zeros((F, 8), jnp.float32)
              .at[:M, 0:4].set(w_s).at[M:two_m, 4:8].set(w_s))
    eye_d = jnp.eye(D, dtype=jnp.float32)
    wc = jnp.kron(eye_d, wc_seg)                                   # [L, 8*D]
    ws = jnp.kron(eye_d, ws_seg)
    sel_state = jnp.array([[1.], [1.], [1.], [1.], [0.], [0.], [0.], [0.]],
                          jnp.float32)
    sel_action = jnp.array([[0.], [0.], [0.], [0.], [1.], [1.], [1.], [1.]],
                           jnp.float32)
    sz = jnp.kron(eye_d, sel_state)                                # [8*D, D]
    su = jnp.kron(eye_d, sel_action)

    # ---- tiling over packed rows ----
    rows_needed = _cdiv(B, D)
    G, RT, R_pad = _pick_row_tiling(rows_needed, row_tile_max)
    B_pad = R_pad * D
    if B_pad != B or F != two_m:
        # Only awkward (B, 2M) pay this copy; typical shapes go straight through.
        x = jnp.pad(x, ((0, B_pad - B), (0, F - two_m)))
    packed = x.reshape(R_pad, L)        # row-major relabeling: free, no transpose

    out = pl.pallas_call(
        _learning_model_kernel,
        out_shape=jax.ShapeDtypeStruct((R_pad, D), jnp.float32),
        grid=(G,),
        in_specs=[
            pl.BlockSpec((RT, L), lambda i: (i, 0)),
            pl.BlockSpec((L, 8 * D), lambda i: (0, 0)),
            pl.BlockSpec((L, 8 * D), lambda i: (0, 0)),
            pl.BlockSpec((8 * D, D), lambda i: (0, 0)),
            pl.BlockSpec((8 * D, D), lambda i: (0, 0)),
        ],
        out_specs=pl.BlockSpec((RT, D), lambda i: (i, 0)),
        compiler_params=pltpu.CompilerParams(
            dimension_semantics=("parallel",)),
    )(packed, wc, ws, sz, su)

    return out.reshape(B_pad, 1)[:B]


def reference_forward(state_action_pair, h_r, h_i):
    """Pure-JAX reference mirroring the PyTorch module (with all scales)."""
    M = h_r.shape[0]
    scale = 1.0 / jnp.sqrt(jnp.float32(M))
    state = state_action_pair[:, :M]
    action = state_action_pair[:, M:]
    hp = lax.Precision.HIGHEST

    def branch(ph):
        x_r = jnp.cos(ph) * scale
        x_i = jnp.sin(ph) * scale
        z_r = jnp.dot(x_r, h_r, precision=hp) + jnp.dot(x_i, h_i, precision=hp)
        z_i = jnp.dot(x_i, h_r, precision=hp) - jnp.dot(x_r, h_i, precision=hp)
        z = z_r ** 2 + z_i ** 2
        return jnp.mean(z, axis=1).reshape(-1, 1)

    z_min = branch(state)
    u_min = branch(action)
    return 10.0 * jnp.log10(u_min) - 10.0 * jnp.log10(z_min)


if __name__ == "__main__":
    # Small shapes consistent with the module: in_size = 2*M, out_size = 1.
    B = 8
    M = 16
    in_size = 2 * M

    key = jax.random.PRNGKey(0)
    k_x, k_hr, k_hi = jax.random.split(key, 3)

    state_action_pair = jax.random.uniform(
        k_x, (B, in_size), dtype=jnp.float32, minval=0.0, maxval=2.0 * math.pi
    )
    H_r = jax.random.normal(k_hr, (M, 2), dtype=jnp.float32)
    H_i = jax.random.normal(k_hi, (M, 2), dtype=jnp.float32)

    out = jax.block_until_ready(learning_model_forward(state_action_pair, H_r, H_i))
    ref = reference_forward(state_action_pair, H_r, H_i)
    assert out.shape == (B, 1)
    assert jnp.allclose(out, ref, atol=1e-4, rtol=1e-4), (out, ref)

    # Also exercise the multi-step ("parallel" grid) + padded-tail path once.
    B2 = 4100
    x2 = jax.random.uniform(
        k_x, (B2, in_size), dtype=jnp.float32, minval=0.0, maxval=2.0 * math.pi
    )
    out2 = jax.block_until_ready(learning_model_forward(x2, H_r, H_i))
    ref2 = reference_forward(x2, H_r, H_i)
    assert out2.shape == (B2, 1)
    assert jnp.allclose(out2, ref2, atol=1e-4, rtol=1e-4)

    print("KERNEL_OK")
</pallas_src>

<mosaic_0001>
module attributes {stable_mosaic.version = 11 : i64} {
  func.func @_learning_model_kernel(%arg0: i32, %arg1: memref<2x128xf32, #tpu.memory_space<vmem>>, %arg2: memref<128x32xf32, #tpu.memory_space<vmem>>, %arg3: memref<128x32xf32, #tpu.memory_space<vmem>>, %arg4: memref<32x4xf32, #tpu.memory_space<vmem>>, %arg5: memref<32x4xf32, #tpu.memory_space<vmem>>, %arg6: memref<2x4xf32, #tpu.memory_space<vmem>>) attributes {dimension_semantics = [#tpu.dimension_semantics<parallel>], iteration_bounds = array<i64: 1>, scalar_prefetch = 0 : i64, scratch_operands = 0 : i64, tpu.core_type = #tpu.core_type<tc>, window_params = [{transform_indices = @transform_0, window_bounds = array<i64: 2, 128>}, {pipeline_mode = #tpu.pipeline_mode<synchronous>, transform_indices = @transform_1, window_bounds = array<i64: 128, 32>}, {pipeline_mode = #tpu.pipeline_mode<synchronous>, transform_indices = @transform_2, window_bounds = array<i64: 128, 32>}, {pipeline_mode = #tpu.pipeline_mode<synchronous>, transform_indices = @transform_3, window_bounds = array<i64: 32, 4>}, {pipeline_mode = #tpu.pipeline_mode<synchronous>, transform_indices = @transform_4, window_bounds = array<i64: 32, 4>}, {transform_indices = @transform_5, window_bounds = array<i64: 2, 4>}]} {
    %c0 = arith.constant 0 : index
    %c0_0 = arith.constant 0 : index
    %0 = vector.load %arg1[%c0, %c0_0] : memref<2x128xf32, #tpu.memory_space<vmem>>, vector<2x128xf32>
    %1 = math.cos %0 : vector<2x128xf32>
    %2 = math.sin %0 : vector<2x128xf32>
    %c0_1 = arith.constant 0 : index
    %c0_2 = arith.constant 0 : index
    %3 = vector.load %arg2[%c0_1, %c0_2] : memref<128x32xf32, #tpu.memory_space<vmem>>, vector<128x32xf32>
    %cst = arith.constant dense<0.000000e+00> : vector<2x32xf32>
    %4 = tpu.matmul %1, %3, %cst {dimension_numbers = #tpu.dot_dimension_numbers<[1], [0], [0], [1], [0, 0, 1, 1], [], []>, precision = #tpu.contract_precision<fp32>} : vector<2x128xf32>, vector<128x32xf32>, vector<2x32xf32> -> vector<2x32xf32>
    %c0_3 = arith.constant 0 : index
    %c0_4 = arith.constant 0 : index
    %5 = vector.load %arg3[%c0_3, %c0_4] : memref<128x32xf32, #tpu.memory_space<vmem>>, vector<128x32xf32>
    %cst_5 = arith.constant dense<0.000000e+00> : vector<2x32xf32>
    %6 = tpu.matmul %2, %5, %cst_5 {dimension_numbers = #tpu.dot_dimension_numbers<[1], [0], [0], [1], [0, 0, 1, 1], [], []>, precision = #tpu.contract_precision<fp32>} : vector<2x128xf32>, vector<128x32xf32>, vector<2x32xf32> -> vector<2x32xf32>
    %7 = arith.addf %4, %6 : vector<2x32xf32>
    %8 = arith.mulf %7, %7 : vector<2x32xf32>
    %c0_6 = arith.constant 0 : index
    %c0_7 = arith.constant 0 : index
    %9 = vector.load %arg4[%c0_6, %c0_7] : memref<32x4xf32, #tpu.memory_space<vmem>>, vector<32x4xf32>
    %cst_8 = arith.constant dense<0.000000e+00> : vector<2x4xf32>
    %10 = tpu.matmul %8, %9, %cst_8 {dimension_numbers = #tpu.dot_dimension_numbers<[1], [0], [0], [1], [0, 0, 1, 1], [], []>, precision = #tpu.contract_precision<fp32>} : vector<2x32xf32>, vector<32x4xf32>, vector<2x4xf32> -> vector<2x4xf32>
    %c0_9 = arith.constant 0 : index
    %c0_10 = arith.constant 0 : index
    %11 = vector.load %arg5[%c0_9, %c0_10] : memref<32x4xf32, #tpu.memory_space<vmem>>, vector<32x4xf32>
    %cst_11 = arith.constant dense<0.000000e+00> : vector<2x4xf32>
    %12 = tpu.matmul %8, %11, %cst_11 {dimension_numbers = #tpu.dot_dimension_numbers<[1], [0], [0], [1], [0, 0, 1, 1], [], []>, precision = #tpu.contract_precision<fp32>} : vector<2x32xf32>, vector<32x4xf32>, vector<2x4xf32> -> vector<2x4xf32>
    %13 = arith.divf %12, %10 : vector<2x4xf32>
    %14 = math.log %13 : vector<2x4xf32>
    %cst_12 = arith.constant 4.34294462 : f32
    %15 = vector.broadcast %cst_12 : f32 to vector<2x4xf32>
    %16 = arith.mulf %15, %14 : vector<2x4xf32>
    %c0_13 = arith.constant 0 : index
    %c0_14 = arith.constant 0 : index
    %17 = vector.load %arg6[%c0_13, %c0_14] : memref<2x4xf32, #tpu.memory_space<vmem>>, vector<2x4xf32>
    tpu.vector_store %arg6[%c0_13, %c0_14], %16 {strides = array<i32>} : memref<2x4xf32, #tpu.memory_space<vmem>>, vector<2x4xf32>,
    return
  }
  func.func @transform_0(%arg0: i32) -> (i32, i32) {
    %c0_i32 = arith.constant 0 : i32
    %c0_i32_0 = arith.constant 0 : i32
    return %arg0, %c0_i32 : i32, i32
  }
  func.func @transform_1(%arg0: i32) -> (i32, i32) {
    %c0_i32 = arith.constant 0 : i32
    %c0_i32_0 = arith.constant 0 : i32
    %c0_i32_1 = arith.constant 0 : i32
    return %c0_i32, %c0_i32_0 : i32, i32
  }
  func.func @transform_2(%arg0: i32) -> (i32, i32) {
    %c0_i32 = arith.constant 0 : i32
    %c0_i32_0 = arith.constant 0 : i32
    %c0_i32_1 = arith.constant 0 : i32
    return %c0_i32, %c0_i32_0 : i32, i32
  }
  func.func @transform_3(%arg0: i32) -> (i32, i32) {
    %c0_i32 = arith.constant 0 : i32
    %c0_i32_0 = arith.constant 0 : i32
    %c0_i32_1 = arith.constant 0 : i32
    return %c0_i32, %c0_i32_0 : i32, i32
  }
  func.func @transform_4(%arg0: i32) -> (i32, i32) {
    %c0_i32 = arith.constant 0 : i32
    %c0_i32_0 = arith.constant 0 : i32
    %c0_i32_1 = arith.constant 0 : i32
    return %c0_i32, %c0_i32_0 : i32, i32
  }
  func.func @transform_5(%arg0: i32) -> (i32, i32) {
    %c0_i32 = arith.constant 0 : i32
    %c0_i32_0 = arith.constant 0 : i32
    return %arg0, %c0_i32 : i32, i32
  }
}

</mosaic_0001>

<llo_original>
// kernel: tpu_custom_call.1
$region0: #{tpu_custom_call.1}
  #allocation0 [shape = 'u32[]', space=smem, size = 0x4, offset = 0x4, fixed_abs, tag = 'smem constant byte address 0x4 - core index']
  #allocation1 [shape = 'u32[144,128]{1,0:T(1,128)}', space=vmem, size = 0x12000, scoped, tag = 'internal scratch']
  %s0 = inlined_call_operand.vmem [shape: f32[2,128], index: 0, kind: input, shape index: {}]
  %s1 = inlined_call_operand.vmem [shape: f32[128,32], index: 1, kind: input, shape index: {}]
  %s2 = inlined_call_operand.vmem [shape: f32[128,32], index: 2, kind: input, shape index: {}]
  %s3 = inlined_call_operand.vmem [shape: f32[32,4], index: 3, kind: input, shape index: {}]
  %s4 = inlined_call_operand.vmem [shape: f32[32,4], index: 4, kind: input, shape index: {}]
  %s5 = inlined_call_operand.hbm [shape: f32[2,4], index: 5, kind: output, shape index: {}]
  %s6 = sld [smem:[#allocation0]]
  $region30: #{tpu_custom_call.1} parent=0
    _
  %s8 = ssub.s32 1, %s6
  %s9 = scalar_select 0, %s8, %s6
  $region1: #{tpu_custom_call.1} parent=0
    #allocation2 [shape = 'u8[1024]{0}', space=vmem, size = 0x400, scoped, tag = 'output window, operand 0, single buffered']
    #allocation3 [shape = 's32[1]{0}', space=sflag, size = 0x4, scoped, tag = 'scoped memory for tpu_custom_call.1']
    %10 = vsyncpa [#allocation3], 0
    // Predicated region
    $region2: #{tpu_custom_call.1} parent=1 // pred_check
      _
    $region3: #{tpu_custom_call.1} parent=1 // pred_check_branch
      %12 = sbr.rel (0) target = $region5
    $region4: #{tpu_custom_call.1} parent=1 // pred_region
      _
    $region5: #{tpu_custom_call.1} parent=1 // pred_fallthru
      _
    // Predicated region
    $region6: #{tpu_custom_call.1} parent=1 // pred_check
      _
    $region7: #{tpu_custom_call.1} parent=1 // pred_check_branch
      %14 = sbr.rel (0) target = $region9
    $region8: #{tpu_custom_call.1} parent=1 // pred_region
      _
    $region9: #{tpu_custom_call.1} parent=1 // pred_fallthru
      _
    // Predicated region
    $region10: #{tpu_custom_call.1} parent=1 // pred_check
      _
    $region11: #{tpu_custom_call.1} parent=1 // pred_check_branch
      %16 = sbr.rel (0) target = $region13
    $region12: #{tpu_custom_call.1} parent=1 // pred_region
      _
    $region13: #{tpu_custom_call.1} parent=1 // pred_fallthru
      _
    // Predicated region
    $region14: #{tpu_custom_call.1} parent=1 // pred_check
      _
    $region15: #{tpu_custom_call.1} parent=1 // pred_check_branch
      %18 = sbr.rel (0) target = $region17
    $region16: #{tpu_custom_call.1} parent=1 // pred_region
      _
    $region17: #{tpu_custom_call.1} parent=1 // pred_fallthru
      _
    // Predicated region
    $region18: #{tpu_custom_call.1} parent=1 // pred_check
      _
    $region19: #{tpu_custom_call.1} parent=1 // pred_check_branch
      %20 = sbr.rel (0) target = $region21
    $region20: #{tpu_custom_call.1} parent=1 // pred_region
      _
    $region21: #{tpu_custom_call.1} parent=1 // pred_fallthru
      _
    %v21 = vld [vmem:[%s0] sm:$0x3]
    %v22 = vand.u32 2147483647, %v21
    %vm23 = vcmp.le.f32.partialorder %v22, 0.7853982
    %vm24 = vcmp.lt.s32.totalorder %v21, 0
    %v25 = vand.u32 %v21, 2139095040
    %v26 = vshrl.u32 %v25, 23
    %v27 = vsub.s32 %v26, 127
    %v28 = vand.u32 2147483647, %v21
    %v29 = vand.u32 %v28, 8388607
    %v30 = vor.u32 %v29, 8388608
    %v31 = vsub.s32 0, %v30
    %v32 = vadd.s32 %v27, 1
    %vm33 = vcmp.gt.s32.totalorder %v32, 0
    %v34 = vsel %vm33, %v32, 0
    %v35 = vshrl.u32 %v34, 5
    %v36 = vand.u32 %v34, 31
    %v37 = vsub.s32 32, %v36
    %v38 = vshrl.u32 683565275, %v37
    %v39 = vshll.u32 683565275, %v36
    %v40 = vshrl.u32 2475754826, %v37
    %v41 = vor.u32 %v39, %v40
    %v42 = vshll.u32 2475754826, %v36
    %v43 = vshrl.u32 2131351028, %v37
    %v44 = vor.u32 %v42, %v43
    %v45 = vshll.u32 2131351028, %v36
    %v46 = vshrl.u32 2102212464, %v37
    %v47 = vor.u32 %v45, %v46
    %v48 = vshll.u32 2102212464, %v36
    %v49 = vshrl.u32 920167782, %v37
    %v50 = vor.u32 %v48, %v49
    %v51 = vshll.u32 920167782, %v36
    %v52 = vshrl.u32 1326507024, %v37
    %v53 = vor.u32 %v51, %v52
    %vm54 = vcmp.lt.s32.totalorder %v35, 1
    %vm55 = vcmp.lt.s32.totalorder %v35, 2
    %vm56 = vcmp.lt.s32.totalorder %v35, 3
    %vm57 = vcmp.lt.s32.totalorder %v35, 4
    %v58 = vsel %vm54, %v38, %v41
    %v59 = vsel %vm57, %v47, 2102212464
    %v60 = vsel %vm56, %v44, %v59
    %v61 = vsel %vm55, %v58, %v60
    %v62 = vsel %vm54, %v41, %v44
    %v63 = vsel %vm57, %v50, 920167782
    %v64 = vsel %vm56, %v47, %v63
    %v65 = vsel %vm55, %v62, %v64
    %v66 = vsel %vm54, %v44, %v47
    %v67 = vsel %vm57, %v53, 1326507024
    %v68 = vsel %vm56, %v50, %v67
    %v69 = vsel %vm55, %v66, %v68
    %v70 = vshll.u32 %v30, 8
    %v71 = vmul.u32.u64.compose %v70, %v69
    %v72 = vextract.low.u32 %v71
    %v73 = vextract.high.u32 %v71
    %v74 = vmul.u32.u64.compose %v70, %v65
    %v75 = vextract.low.u32 %v74
    %v76 = vextract.high.u32 %v74
    %v77 = vmul.u32 %v70, %v61
    %v78 = vadd.s32 %v73, %v75
    %vm79 = vc.u32 %v73, %v75
    %v80 = vadd.s32 %v76, 1
    %v81 = vsel %vm79, %v80, %v76
    %v82 = vadd.s32 %v77, %v81
    %v83 = vadd.s32 %v82, 536870912
    %v84 = vshrl.u32 %v83, 30
    %v85 = vshll.u32 %v84, 30
    %v86 = vsub.s32 %v82, %v85
    %vm87 = vcmp.lt.s32.totalorder %v86, 0
    %v88 = vsub.s32 0, %v86
    %v89 = vsel %vm87, %v88, %v86
    %v90 = vclz %v89
    %v91 = vsub.s32 %v90, 2
    %vm92 = vcmp.gt.s32.totalorder 0, %v91
    %v93 = vsel %vm92, 0, %v91
    %v94 = vsub.s32 32, %v93
    %v95 = vshll.u32 %v86, %v93
    %v96 = vshrl.u32 %v78, %v94
    %v97 = vor.u32 %v95, %v96
    %v98 = vsub.s32 4294967266, %v93
    %v99 = vadd.s32 %v98, 127
    %v100 = vshll.u32 %v99, 23
    %v101 = vor.u32 4788187, %v100
    %v102 = vand.u32 2147483647, %v101
    %v104 = vcvt.s32.f32 %v97
    %v105 = vmul.f32 %v104, %v102
    %v106 = vxor.u32 %v105, 2147483648
    %v107 = vsel %vm24, %v106, %v105
    %v108 = vsub.s32 4, %v84
    %v109 = vsel %vm24, %v108, %v84
    %v110 = vsel %vm23, %v21, %v107
    %v111 = vsel %vm23, 0, %v109
    %v112 = vcosq.f32.pop %v110
    %v113 = vsinq.f32.pop %v110
    %vm114 = vweird.f32 %v21
    %v115 = vand.u32 %v111, 3
    %vm116 = vcmp.lt.s32.totalorder %v115, 2
    %vm117 = vcmp.eq.s32.totalorder %v115, 0
    %v118 = vxor.u32 %v113, 2147483648
    %v119 = vsel %vm117, %v112, %v118
    %vm120 = vcmp.eq.s32.totalorder %v115, 2
    %v121 = vxor.u32 %v112, 2147483648
    %v122 = vsel %vm120, %v121, %v113
    %v123 = vsel %vm116, %v119, %v122
    %v124 = vsel %vm114, nan, %v123
    %v125 = vand.u32 2147483647, %v21
    %vm126 = vcmp.le.f32.partialorder %v125, 0.7853982
    %vm127 = vcmp.lt.s32.totalorder %v21, 0
    %v128 = vand.u32 %v21, 2139095040
    %v129 = vshrl.u32 %v128, 23
    %v130 = vsub.s32 %v129, 127
    %v131 = vand.u32 2147483647, %v21
    %v132 = vand.u32 %v131, 8388607
    %v133 = vor.u32 %v132, 8388608
    %v134 = vsub.s32 0, %v133
    %v135 = vadd.s32 %v130, 1
    %vm136 = vcmp.gt.s32.totalorder %v135, 0
    %v137 = vsel %vm136, %v135, 0
    %v138 = vshrl.u32 %v137, 5
    %v139 = vand.u32 %v137, 31
    %v140 = vsub.s32 32, %v139
    %v141 = vshrl.u32 683565275, %v140
    %v142 = vshll.u32 683565275, %v139
    %v143 = vshrl.u32 2475754826, %v140
    %v144 = vor.u32 %v142, %v143
    %v145 = vshll.u32 2475754826, %v139
    %v146 = vshrl.u32 2131351028, %v140
    %v147 = vor.u32 %v145, %v146
    %v148 = vshll.u32 2131351028, %v139
    %v149 = vshrl.u32 2102212464, %v140
    %v150 = vor.u32 %v148, %v149
    %v151 = vshll.u32 2102212464, %v139
    %v152 = vshrl.u32 920167782, %v140
    %v153 = vor.u32 %v151, %v152
    %v154 = vshll.u32 920167782, %v139
    %v155 = vshrl.u32 1326507024, %v140
    %v156 = vor.u32 %v154, %v155
    %vm157 = vcmp.lt.s32.totalorder %v138, 1
    %vm158 = vcmp.lt.s32.totalorder %v138, 2
    %vm159 = vcmp.lt.s32.totalorder %v138, 3
    %vm160 = vcmp.lt.s32.totalorder %v138, 4
    %v161 = vsel %vm157, %v141, %v144
    %v162 = vsel %vm160, %v150, 2102212464
    %v163 = vsel %vm159, %v147, %v162
    %v164 = vsel %vm158, %v161, %v163
    %v165 = vsel %vm157, %v144, %v147
    %v166 = vsel %vm160, %v153, 920167782
    %v167 = vsel %vm159, %v150, %v166
    %v168 = vsel %vm158, %v165, %v167
    %v169 = vsel %vm157, %v147, %v150
    %v170 = vsel %vm160, %v156, 1326507024
    %v171 = vsel %vm159, %v153, %v170
    %v172 = vsel %vm158, %v169, %v171
    %v173 = vshll.u32 %v133, 8
    %v174 = vmul.u32.u64.compose %v173, %v172
    %v175 = vextract.low.u32 %v174
    %v176 = vextract.high.u32 %v174
    %v177 = vmul.u32.u64.compose %v173, %v168
    %v178 = vextract.low.u32 %v177
    %v179 = vextract.high.u32 %v177
    %v180 = vmul.u32 %v173, %v164
    %v181 = vadd.s32 %v176, %v178
    %vm182 = vc.u32 %v176, %v178
    %v183 = vadd.s32 %v179, 1
    %v184 = vsel %vm182, %v183, %v179
    %v185 = vadd.s32 %v180, %v184
    %v186 = vadd.s32 %v185, 536870912
    %v187 = vshrl.u32 %v186, 30
    %v188 = vshll.u32 %v187, 30
    %v189 = vsub.s32 %v185, %v188
    %vm190 = vcmp.lt.s32.totalorder %v189, 0
    %v191 = vsub.s32 0, %v189
    %v192 = vsel %vm190, %v191, %v189
    %v193 = vclz %v192
    %v194 = vsub.s32 %v193, 2
    %vm195 = vcmp.gt.s32.totalorder 0, %v194
    %v196 = vsel %vm195, 0, %v194
    %v197 = vsub.s32 32, %v196
    %v198 = vshll.u32 %v189, %v196
    %v199 = vshrl.u32 %v181, %v197
    %v200 = vor.u32 %v198, %v199
    %v201 = vsub.s32 4294967266, %v196
    %v202 = vadd.s32 %v201, 127
    %v203 = vshll.u32 %v202, 23
    %v204 = vor.u32 4788187, %v203
    %v205 = vand.u32 2147483647, %v204
    %v207 = vcvt.s32.f32 %v200
    %v208 = vmul.f32 %v207, %v205
    %v209 = vxor.u32 %v208, 2147483648
    %v210 = vsel %vm127, %v209, %v208
    %v211 = vsub.s32 4, %v187
    %v212 = vsel %vm127, %v211, %v187
    %v213 = vsel %vm126, %v21, %v210
    %v214 = vsel %vm126, 0, %v212
    %v215 = vcosq.f32.pop %v213
    %v216 = vsinq.f32.pop %v213
    %vm217 = vweird.f32 %v21
    %v218 = vadd.s32 %v214, 3
    %v219 = vand.u32 %v218, 3
    %vm220 = vcmp.lt.s32.totalorder %v219, 2
    %vm221 = vcmp.eq.s32.totalorder %v219, 0
    %v222 = vxor.u32 %v216, 2147483648
    %v223 = vsel %vm221, %v215, %v222
    %vm224 = vcmp.eq.s32.totalorder %v219, 2
    %v225 = vxor.u32 %v215, 2147483648
    %v226 = vsel %vm224, %v225, %v216
    %v227 = vsel %vm220, %v223, %v226
    %v228 = vsel %vm217, nan, %v227
    %v229 = vld [vmem:[%s1] sm:$0xff]
    %v230 = vld [vmem:[%s1 + $0x8] sm:$0xff]
    %v231 = vld [vmem:[%s1 + $0x10] sm:$0xff]
    %v232 = vld [vmem:[%s1 + $0x18] sm:$0xff]
    %v233 = vld [vmem:[%s1 + $0x20] sm:$0xff]
    %v234 = vld [vmem:[%s1 + $0x28] sm:$0xff]
    %v235 = vld [vmem:[%s1 + $0x30] sm:$0xff]
    %v236 = vld [vmem:[%s1 + $0x38] sm:$0xff]
    %v237 = vld [vmem:[%s1 + $0x40] sm:$0xff]
    %v238 = vld [vmem:[%s1 + $0x48] sm:$0xff]
    %v239 = vld [vmem:[%s1 + $0x50] sm:$0xff]
    %v240 = vld [vmem:[%s1 + $0x58] sm:$0xff]
    %v241 = vld [vmem:[%s1 + $0x60] sm:$0xff]
    %v242 = vld [vmem:[%s1 + $0x68] sm:$0xff]
    %v243 = vld [vmem:[%s1 + $0x70] sm:$0xff]
    %v244 = vld [vmem:[%s1 + $0x78] sm:$0xff]
    %v245 = vld [vmem:[%s2] sm:$0xff]
    %v246 = vld [vmem:[%s2 + $0x8] sm:$0xff]
    %v247 = vld [vmem:[%s2 + $0x10] sm:$0xff]
    %v248 = vld [vmem:[%s2 + $0x18] sm:$0xff]
    %v249 = vld [vmem:[%s2 + $0x20] sm:$0xff]
    %v250 = vld [vmem:[%s2 + $0x28] sm:$0xff]
    %v251 = vld [vmem:[%s2 + $0x30] sm:$0xff]
    %v252 = vld [vmem:[%s2 + $0x38] sm:$0xff]
    %v253 = vld [vmem:[%s2 + $0x40] sm:$0xff]
    %v254 = vld [vmem:[%s2 + $0x48] sm:$0xff]
    %v255 = vld [vmem:[%s2 + $0x50] sm:$0xff]
    %v256 = vld [vmem:[%s2 + $0x58] sm:$0xff]
    %v257 = vld [vmem:[%s2 + $0x60] sm:$0xff]
    %v258 = vld [vmem:[%s2 + $0x68] sm:$0xff]
    %v259 = vld [vmem:[%s2 + $0x70] sm:$0xff]
    %v260 = vld [vmem:[%s2 + $0x78] sm:$0xff]
    %261 = vmatprep.subr.mxu0 0.0
    %v262 = vand.u32 %v245, 4294901760
    %263 = vmatpush1.msra.mxu0 %v262
    %264 = vmatprep.subr.mxu0 0.0
    %v265 = vand.u32 %v246, 4294901760
    %266 = vmatpush1.msra.mxu0 %v265
    %267 = vmatprep.subr.mxu0 0.0
    %v268 = vand.u32 %v247, 4294901760
    %269 = vmatpush1.msra.mxu0 %v268
    %270 = vmatprep.subr.mxu0 0.0
    %v271 = vand.u32 %v248, 4294901760
    %272 = vmatpush1.msra.mxu0 %v271
    %273 = vmatprep.subr.mxu0 0.0
    %v274 = vand.u32 %v249, 4294901760
    %275 = vmatpush1.msra.mxu0 %v274
    %276 = vmatprep.subr.mxu0 0.0
    %v277 = vand.u32 %v250, 4294901760
    %278 = vmatpush1.msra.mxu0 %v277
    %279 = vmatprep.subr.mxu0 0.0
    %v280 = vand.u32 %v251, 4294901760
    %281 = vmatpush1.msra.mxu0 %v280
    %282 = vmatprep.subr.mxu0 0.0
    %v283 = vand.u32 %v252, 4294901760
    %284 = vmatpush1.msra.mxu0 %v283
    %285 = vmatprep.subr.mxu0 0.0
    %v286 = vand.u32 %v253, 4294901760
    %287 = vmatpush1.msra.mxu0 %v286
    %288 = vmatprep.subr.mxu0 0.0
    %v289 = vand.u32 %v254, 4294901760
    %290 = vmatpush1.msra.mxu0 %v289
    %291 = vmatprep.subr.mxu0 0.0
    %v292 = vand.u32 %v255, 4294901760
    %293 = vmatpush1.msra.mxu0 %v292
    %294 = vmatprep.subr.mxu0 0.0
    %v295 = vand.u32 %v256, 4294901760
    %296 = vmatpush1.msra.mxu0 %v295
    %297 = vmatprep.subr.mxu0 0.0
    %v298 = vand.u32 %v257, 4294901760
    %299 = vmatpush1.msra.mxu0 %v298
    %300 = vmatprep.subr.mxu0 0.0
    %v301 = vand.u32 %v258, 4294901760
    %302 = vmatpush1.msra.mxu0 %v301
    %303 = vmatprep.subr.mxu0 0.0
    %v304 = vand.u32 %v259, 4294901760
    %305 = vmatpush1.msra.mxu0 %v304
    %306 = vmatprep.subr.mxu0 0.0
    %v307 = vand.u32 %v260, 4294901760
    %308 = vmatpush1.msra.mxu0 %v307
    %309 = vmatprep.subr.mxu0 0.0
    %310 = vmatpush1.msra.mxu0 0.0
    %311 = vmatprep.subr.mxu0 0.0
    %312 = vmatpush1.msra.mxu0 0.0
    %313 = vmatprep.subr.mxu0 0.0
    %314 = vmatpush1.msra.mxu0 0.0
    %315 = vmatprep.subr.mxu0 0.0
    %316 = vmatpush1.msra.mxu0 0.0
    %317 = vmatprep.subr.mxu0 0.0
    %318 = vmatpush1.msra.mxu0 0.0
    %319 = vmatprep.subr.mxu0 0.0
    %320 = vmatpush1.msra.mxu0 0.0
    %321 = vmatprep.subr.mxu0 0.0
    %322 = vmatpush1.msra.mxu0 0.0
    %323 = vmatprep.subr.mxu0 0.0
    %324 = vmatpush1.msra.mxu0 0.0
    %325 = vmatprep.subr.mxu0 0.0
    %326 = vmatpush1.msra.mxu0 0.0
    %327 = vmatprep.subr.mxu0 0.0
    %328 = vmatpush1.msra.mxu0 0.0
    %329 = vmatprep.subr.mxu0 0.0
    %330 = vmatpush1.msra.mxu0 0.0
    %331 = vmatprep.subr.mxu0 0.0
    %332 = vmatpush1.msra.mxu0 0.0
    %333 = vmatprep.subr.mxu0 0.0
    %334 = vmatpush1.msra.mxu0 0.0
    %335 = vmatprep.subr.mxu0 0.0
    %336 = vmatpush1.msra.mxu0 0.0
    %337 = vmatprep.subr.mxu0 0.0
    %338 = vmatpush1.msra.mxu0 0.0
    %339 = vmatprep.subr.mxu0 0.0
    %340 = vmatpush1.msra.mxu0 0.0
    %341 = vmatprep.mubr.f32.mxu0 0.0
    %v342 = vand.u32 %v228, 4294901760
    %v343 = vsub.f32 %v228, %v342
    %v344 = vand.u32 %v343, 4294901760
    %v345 = vsub.f32 %v343, %v344
    %v346 = vand.u32 %v345, 4294901760
    %347 = vmatmul.mubr.f32.gmra.mrb[0].mxu0 %v346
    %v348 = vpop.f32.mrb[0].mxu0
    %v349 = vadd.f32 0.0, %v348
    %v350 = vpop.f32.mrb[0].mxu0
    %351 = vdwg.mxu0
    %352 = vmatprep.subr.mxu0 0.0
    %v353 = vand.u32 %v245, 4294901760
    %v354 = vsub.f32 %v245, %v353
    %v355 = vand.u32 %v354, 4294901760
    %v356 = vsub.f32 %v354, %v355
    %v357 = vand.u32 %v356, 4294901760
    %358 = vmatpush1.msra.mxu0 %v357
    %359 = vmatprep.subr.mxu0 0.0
    %v360 = vand.u32 %v246, 4294901760
    %v361 = vsub.f32 %v246, %v360
    %v362 = vand.u32 %v361, 4294901760
    %v363 = vsub.f32 %v361, %v362
    %v364 = vand.u32 %v363, 4294901760
    %365 = vmatpush1.msra.mxu0 %v364
    %366 = vmatprep.subr.mxu0 0.0
    %v367 = vand.u32 %v247, 4294901760
    %v368 = vsub.f32 %v247, %v367
    %v369 = vand.u32 %v368, 4294901760
    %v370 = vsub.f32 %v368, %v369
    %v371 = vand.u32 %v370, 4294901760
    %372 = vmatpush1.msra.mxu0 %v371
    %373 = vmatprep.subr.mxu0 0.0
    %v374 = vand.u32 %v248, 4294901760
    %v375 = vsub.f32 %v248, %v374
    %v376 = vand.u32 %v375, 4294901760
    %v377 = vsub.f32 %v375, %v376
    %v378 = vand.u32 %v377, 4294901760
    %379 = vmatpush1.msra.mxu0 %v378
    %380 = vmatprep.subr.mxu0 0.0
    %v381 = vand.u32 %v249, 4294901760
    %v382 = vsub.f32 %v249, %v381
    %v383 = vand.u32 %v382, 4294901760
    %v384 = vsub.f32 %v382, %v383
    %v385 = vand.u32 %v384, 4294901760
    %386 = vmatpush1.msra.mxu0 %v385
    %387 = vmatprep.subr.mxu0 0.0
    %v388 = vand.u32 %v250, 4294901760
    %v389 = vsub.f32 %v250, %v388
    %v390 = vand.u32 %v389, 4294901760
    %v391 = vsub.f32 %v389, %v390
    %v392 = vand.u32 %v391, 4294901760
    %393 = vmatpush1.msra.mxu0 %v392
    %394 = vmatprep.subr.mxu0 0.0
    %v395 = vand.u32 %v251, 4294901760
    %v396 = vsub.f32 %v251, %v395
    %v397 = vand.u32 %v396, 4294901760
    %v398 = vsub.f32 %v396, %v397
    %v399 = vand.u32 %v398, 4294901760
    %400 = vmatpush1.msra.mxu0 %v399
    %401 = vmatprep.subr.mxu0 0.0
    %v402 = vand.u32 %v252, 4294901760
    %v403 = vsub.f32 %v252, %v402
    %v404 = vand.u32 %v403, 4294901760
    %v405 = vsub.f32 %v403, %v404
    %v406 = vand.u32 %v405, 4294901760
    %407 = vmatpush1.msra.mxu0 %v406
    %408 = vmatprep.subr.mxu0 0.0
    %v409 = vand.u32 %v253, 4294901760
    %v410 = vsub.f32 %v253, %v409
    %v411 = vand.u32 %v410, 4294901760
    %v412 = vsub.f32 %v410, %v411
    %v413 = vand.u32 %v412, 4294901760
    %414 = vmatpush1.msra.mxu0 %v413
    %415 = vmatprep.subr.mxu0 0.0
    %v416 = vand.u32 %v254, 4294901760
    %v417 = vsub.f32 %v254, %v416
    %v418 = vand.u32 %v417, 4294901760
    %v419 = vsub.f32 %v417, %v418
    %v420 = vand.u32 %v419, 4294901760
    %421 = vmatpush1.msra.mxu0 %v420
    %422 = vmatprep.subr.mxu0 0.0
    %v423 = vand.u32 %v255, 4294901760
    %v424 = vsub.f32 %v255, %v423
    %v425 = vand.u32 %v424, 4294901760
    %v426 = vsub.f32 %v424, %v425
    %v427 = vand.u32 %v426, 4294901760
    %428 = vmatpush1.msra.mxu0 %v427
    %429 = vmatprep.subr.mxu0 0.0
    %v430 = vand.u32 %v256, 4294901760
    %v431 = vsub.f32 %v256, %v430
    %v432 = vand.u32 %v431, 4294901760
    %v433 = vsub.f32 %v431, %v432
    %v434 = vand.u32 %v433, 4294901760
    %435 = vmatpush1.msra.mxu0 %v434
    %436 = vmatprep.subr.mxu0 0.0
    %v437 = vand.u32 %v257, 4294901760
    %v438 = vsub.f32 %v257, %v437
    %v439 = vand.u32 %v438, 4294901760
    %v440 = vsub.f32 %v438, %v439
    %v441 = vand.u32 %v440, 4294901760
    %442 = vmatpush1.msra.mxu0 %v441
    %443 = vmatprep.subr.mxu0 0.0
    %v444 = vand.u32 %v258, 4294901760
    %v445 = vsub.f32 %v258, %v444
    %v446 = vand.u32 %v445, 4294901760
    %v447 = vsub.f32 %v445, %v446
    %v448 = vand.u32 %v447, 4294901760
    %449 = vmatpush1.msra.mxu0 %v448
    %450 = vmatprep.subr.mxu0 0.0
    %v451 = vand.u32 %v259, 4294901760
    %v452 = vsub.f32 %v259, %v451
    %v453 = vand.u32 %v452, 4294901760
    %v454 = vsub.f32 %v452, %v453
    %v455 = vand.u32 %v454, 4294901760
    %456 = vmatpush1.msra.mxu0 %v455
    %457 = vmatprep.subr.mxu0 0.0
    %v458 = vand.u32 %v260, 4294901760
    %v459 = vsub.f32 %v260, %v458
    %v460 = vand.u32 %v459, 4294901760
    %v461 = vsub.f32 %v459, %v460
    %v462 = vand.u32 %v461, 4294901760
    %463 = vmatpush1.msra.mxu0 %v462
    %464 = vmatprep.subr.mxu0 0.0
    %465 = vmatpush1.msra.mxu0 0.0
    %466 = vmatprep.subr.mxu0 0.0
    %467 = vmatpush1.msra.mxu0 0.0
    %468 = vmatprep.subr.mxu0 0.0
    %469 = vmatpush1.msra.mxu0 0.0
    %470 = vmatprep.subr.mxu0 0.0
    %471 = vmatpush1.msra.mxu0 0.0
    %472 = vmatprep.subr.mxu0 0.0
    %473 = vmatpush1.msra.mxu0 0.0
    %474 = vmatprep.subr.mxu0 0.0
    %475 = vmatpush1.msra.mxu0 0.0
    %476 = vmatprep.subr.mxu0 0.0
    %477 = vmatpush1.msra.mxu0 0.0
    %478 = vmatprep.subr.mxu0 0.0
    %479 = vmatpush1.msra.mxu0 0.0
    %480 = vmatprep.subr.mxu0 0.0
    %481 = vmatpush1.msra.mxu0 0.0
    %482 = vmatprep.subr.mxu0 0.0
    %483 = vmatpush1.msra.mxu0 0.0
    %484 = vmatprep.subr.mxu0 0.0
    %485 = vmatpush1.msra.mxu0 0.0
    %486 = vmatprep.subr.mxu0 0.0
    %487 = vmatpush1.msra.mxu0 0.0
    %488 = vmatprep.subr.mxu0 0.0
    %489 = vmatpush1.msra.mxu0 0.0
    %490 = vmatprep.subr.mxu0 0.0
    %491 = vmatpush1.msra.mxu0 0.0
    %492 = vmatprep.subr.mxu0 0.0
    %493 = vmatpush1.msra.mxu0 0.0
    %494 = vmatprep.subr.mxu0 0.0
    %495 = vmatpush1.msra.mxu0 0.0
    %496 = vmatprep.mubr.f32.mxu0 0.0
    %v497 = vand.u32 %v228, 4294901760
    %498 = vmatmul.mubr.f32.gmra.mrb[0].mxu0 %v497
    %v499 = vpop.f32.mrb[0].mxu0
    %v500 = vadd.f32 %v349, %v499
    %v501 = vpop.f32.mrb[0].mxu0
    %502 = vdwg.mxu0
    %503 = vmatprep.subr.mxu0 0.0
    %v504 = vand.u32 %v245, 4294901760
    %v505 = vsub.f32 %v245, %v504
    %506 = vmatpush1.msra.mxu0 %v505
    %507 = vmatprep.subr.mxu0 0.0
    %v508 = vand.u32 %v246, 4294901760
    %v509 = vsub.f32 %v246, %v508
    %510 = vmatpush1.msra.mxu0 %v509
    %511 = vmatprep.subr.mxu0 0.0
    %v512 = vand.u32 %v247, 4294901760
    %v513 = vsub.f32 %v247, %v512
    %514 = vmatpush1.msra.mxu0 %v513
    %515 = vmatprep.subr.mxu0 0.0
    %v516 = vand.u32 %v248, 4294901760
    %v517 = vsub.f32 %v248, %v516
    %518 = vmatpush1.msra.mxu0 %v517
    %519 = vmatprep.subr.mxu0 0.0
    %v520 = vand.u32 %v249, 4294901760
    %v521 = vsub.f32 %v249, %v520
    %522 = vmatpush1.msra.mxu0 %v521
    %523 = vmatprep.subr.mxu0 0.0
    %v524 = vand.u32 %v250, 4294901760
    %v525 = vsub.f32 %v250, %v524
    %526 = vmatpush1.msra.mxu0 %v525
    %527 = vmatprep.subr.mxu0 0.0
    %v528 = vand.u32 %v251, 4294901760
    %v529 = vsub.f32 %v251, %v528
    %530 = vmatpush1.msra.mxu0 %v529
    %531 = vmatprep.subr.mxu0 0.0
    %v532 = vand.u32 %v252, 4294901760
    %v533 = vsub.f32 %v252, %v532
    %534 = vmatpush1.msra.mxu0 %v533
    %535 = vmatprep.subr.mxu0 0.0
    %v536 = vand.u32 %v253, 4294901760
    %v537 = vsub.f32 %v253, %v536
    %538 = vmatpush1.msra.mxu0 %v537
    %539 = vmatprep.subr.mxu0 0.0
    %v540 = vand.u32 %v254, 4294901760
    %v541 = vsub.f32 %v254, %v540
    %542 = vmatpush1.msra.mxu0 %v541
    %543 = vmatprep.subr.mxu0 0.0
    %v544 = vand.u32 %v255, 4294901760
    %v545 = vsub.f32 %v255, %v544
    %546 = vmatpush1.msra.mxu0 %v545
    %547 = vmatprep.subr.mxu0 0.0
    %v548 = vand.u32 %v256, 4294901760
    %v549 = vsub.f32 %v256, %v548
    %550 = vmatpush1.msra.mxu0 %v549
    %551 = vmatprep.subr.mxu0 0.0
    %v552 = vand.u32 %v257, 4294901760
    %v553 = vsub.f32 %v257, %v552
    %554 = vmatpush1.msra.mxu0 %v553
    %555 = vmatprep.subr.mxu0 0.0
    %v556 = vand.u32 %v258, 4294901760
    %v557 = vsub.f32 %v258, %v556
    %558 = vmatpush1.msra.mxu0 %v557
    %559 = vmatprep.subr.mxu0 0.0
    %v560 = vand.u32 %v259, 4294901760
    %v561 = vsub.f32 %v259, %v560
    %562 = vmatpush1.msra.mxu0 %v561
    %563 = vmatprep.subr.mxu0 0.0
    %v564 = vand.u32 %v260, 4294901760
    %v565 = vsub.f32 %v260, %v564
    %566 = vmatpush1.msra.mxu0 %v565
    %567 = vmatprep.subr.mxu0 0.0
    %568 = vmatpush1.msra.mxu0 0.0
    %569 = vmatprep.subr.mxu0 0.0
    %570 = vmatpush1.msra.mxu0 0.0
    %571 = vmatprep.subr.mxu0 0.0
    %572 = vmatpush1.msra.mxu0 0.0
    %573 = vmatprep.subr.mxu0 0.0
    %574 = vmatpush1.msra.mxu0 0.0
    %575 = vmatprep.subr.mxu0 0.0
    %576 = vmatpush1.msra.mxu0 0.0
    %577 = vmatprep.subr.mxu0 0.0
    %578 = vmatpush1.msra.mxu0 0.0
    %579 = vmatprep.subr.mxu0 0.0
    %580 = vmatpush1.msra.mxu0 0.0
    %581 = vmatprep.subr.mxu0 0.0
    %582 = vmatpush1.msra.mxu0 0.0
    %583 = vmatprep.subr.mxu0 0.0
    %584 = vmatpush1.msra.mxu0 0.0
    %585 = vmatprep.subr.mxu0 0.0
    %586 = vmatpush1.msra.mxu0 0.0
    %587 = vmatprep.subr.mxu0 0.0
    %588 = vmatpush1.msra.mxu0 0.0
    %589 = vmatprep.subr.mxu0 0.0
    %590 = vmatpush1.msra.mxu0 0.0
    %591 = vmatprep.subr.mxu0 0.0
    %592 = vmatpush1.msra.mxu0 0.0
    %593 = vmatprep.subr.mxu0 0.0
    %594 = vmatpush1.msra.mxu0 0.0
    %595 = vmatprep.subr.mxu0 0.0
    %596 = vmatpush1.msra.mxu0 0.0
    %597 = vmatprep.subr.mxu0 0.0
    %598 = vmatpush1.msra.mxu0 0.0
    %599 = vmatprep.mubr.f32.mxu0 0.0
    %v600 = vand.u32 %v228, 4294901760
    %v601 = vsub.f32 %v228, %v600
    %602 = vmatmul.mubr.f32.gmra.mrb[0].mxu0 %v601
    %v603 = vpop.f32.mrb[0].mxu0
    %v604 = vadd.f32 %v500, %v603
    %v605 = vpop.f32.mrb[0].mxu0
    %606 = vdwg.mxu0
    %607 = vmatprep.subr.mxu0 0.0
    %v608 = vand.u32 %v245, 4294901760
    %609 = vmatpush1.msra.mxu0 %v608
    %610 = vmatprep.subr.mxu0 0.0
    %v611 = vand.u32 %v246, 4294901760
    %612 = vmatpush1.msra.mxu0 %v611
    %613 = vmatprep.subr.mxu0 0.0
    %v614 = vand.u32 %v247, 4294901760
    %615 = vmatpush1.msra.mxu0 %v614
    %616 = vmatprep.subr.mxu0 0.0
    %v617 = vand.u32 %v248, 4294901760
    %618 = vmatpush1.msra.mxu0 %v617
    %619 = vmatprep.subr.mxu0 0.0
    %v620 = vand.u32 %v249, 4294901760
    %621 = vmatpush1.msra.mxu0 %v620
    %622 = vmatprep.subr.mxu0 0.0
    %v623 = vand.u32 %v250, 4294901760
    %624 = vmatpush1.msra.mxu0 %v623
    %625 = vmatprep.subr.mxu0 0.0
    %v626 = vand.u32 %v251, 4294901760
    %627 = vmatpush1.msra.mxu0 %v626
    %628 = vmatprep.subr.mxu0 0.0
    %v629 = vand.u32 %v252, 4294901760
    %630 = vmatpush1.msra.mxu0 %v629
    %631 = vmatprep.subr.mxu0 0.0
    %v632 = vand.u32 %v253, 4294901760
    %633 = vmatpush1.msra.mxu0 %v632
    %634 = vmatprep.subr.mxu0 0.0
    %v635 = vand.u32 %v254, 4294901760
    %636 = vmatpush1.msra.mxu0 %v635
    %637 = vmatprep.subr.mxu0 0.0
    %v638 = vand.u32 %v255, 4294901760
    %639 = vmatpush1.msra.mxu0 %v638
    %640 = vmatprep.subr.mxu0 0.0
    %v641 = vand.u32 %v256, 4294901760
    %642 = vmatpush1.msra.mxu0 %v641
    %643 = vmatprep.subr.mxu0 0.0
    %v644 = vand.u32 %v257, 4294901760
    %645 = vmatpush1.msra.mxu0 %v644
    %646 = vmatprep.subr.mxu0 0.0
    %v647 = vand.u32 %v258, 4294901760
    %648 = vmatpush1.msra.mxu0 %v647
    %649 = vmatprep.subr.mxu0 0.0
    %v650 = vand.u32 %v259, 4294901760
    %651 = vmatpush1.msra.mxu0 %v650
    %652 = vmatprep.subr.mxu0 0.0
    %v653 = vand.u32 %v260, 4294901760
    %654 = vmatpush1.msra.mxu0 %v653
    %655 = vmatprep.subr.mxu0 0.0
    %656 = vmatpush1.msra.mxu0 0.0
    %657 = vmatprep.subr.mxu0 0.0
    %658 = vmatpush1.msra.mxu0 0.0
    %659 = vmatprep.subr.mxu0 0.0
    %660 = vmatpush1.msra.mxu0 0.0
    %661 = vmatprep.subr.mxu0 0.0
    %662 = vmatpush1.msra.mxu0 0.0
    %663 = vmatprep.subr.mxu0 0.0
    %664 = vmatpush1.msra.mxu0 0.0
    %665 = vmatprep.subr.mxu0 0.0
    %666 = vmatpush1.msra.mxu0 0.0
    %667 = vmatprep.subr.mxu0 0.0
    %668 = vmatpush1.msra.mxu0 0.0
    %669 = vmatprep.subr.mxu0 0.0
    %670 = vmatpush1.msra.mxu0 0.0
    %671 = vmatprep.subr.mxu0 0.0
    %672 = vmatpush1.msra.mxu0 0.0
    %673 = vmatprep.subr.mxu0 0.0
    %674 = vmatpush1.msra.mxu0 0.0
    %675 = vmatprep.subr.mxu0 0.0
    %676 = vmatpush1.msra.mxu0 0.0
    %677 = vmatprep.subr.mxu0 0.0
    %678 = vmatpush1.msra.mxu0 0.0
    %679 = vmatprep.subr.mxu0 0.0
    %680 = vmatpush1.msra.mxu0 0.0
    %681 = vmatprep.subr.mxu0 0.0
    %682 = vmatpush1.msra.mxu0 0.0
    %683 = vmatprep.subr.mxu0 0.0
    %684 = vmatpush1.msra.mxu0 0.0
    %685 = vmatprep.subr.mxu0 0.0
    %686 = vmatpush1.msra.mxu0 0.0
    %687 = vmatprep.mubr.f32.mxu0 0.0
    %v688 = vand.u32 %v228, 4294901760
    %v689 = vsub.f32 %v228, %v688
    %v690 = vand.u32 %v689, 4294901760
    %691 = vmatmul.mubr.f32.gmra.mrb[0].mxu0 %v690
    %v692 = vpop.f32.mrb[0].mxu0
    %v693 = vadd.f32 %v604, %v692
    %v694 = vpop.f32.mrb[0].mxu0
    %695 = vdwg.mxu0
    %696 = vmatprep.subr.mxu0 0.0
    %v697 = vand.u32 %v245, 4294901760
    %v698 = vsub.f32 %v245, %v697
    %v699 = vand.u32 %v698, 4294901760
    %700 = vmatpush1.msra.mxu0 %v699
    %701 = vmatprep.subr.mxu0 0.0
    %v702 = vand.u32 %v246, 4294901760
    %v703 = vsub.f32 %v246, %v702
    %v704 = vand.u32 %v703, 4294901760
    %705 = vmatpush1.msra.mxu0 %v704
    %706 = vmatprep.subr.mxu0 0.0
    %v707 = vand.u32 %v247, 4294901760
    %v708 = vsub.f32 %v247, %v707
    %v709 = vand.u32 %v708, 4294901760
    %710 = vmatpush1.msra.mxu0 %v709
    %711 = vmatprep.subr.mxu0 0.0
    %v712 = vand.u32 %v248, 4294901760
    %v713 = vsub.f32 %v248, %v712
    %v714 = vand.u32 %v713, 4294901760
    %715 = vmatpush1.msra.mxu0 %v714
    %716 = vmatprep.subr.mxu0 0.0
    %v717 = vand.u32 %v249, 4294901760
    %v718 = vsub.f32 %v249, %v717
    %v719 = vand.u32 %v718, 4294901760
    %720 = vmatpush1.msra.mxu0 %v719
    %721 = vmatprep.subr.mxu0 0.0
    %v722 = vand.u32 %v250, 4294901760
    %v723 = vsub.f32 %v250, %v722
    %v724 = vand.u32 %v723, 4294901760
    %725 = vmatpush1.msra.mxu0 %v724
    %726 = vmatprep.subr.mxu0 0.0
    %v727 = vand.u32 %v251, 4294901760
    %v728 = vsub.f32 %v251, %v727
    %v729 = vand.u32 %v728, 4294901760
    %730 = vmatpush1.msra.mxu0 %v729
    %731 = vmatprep.subr.mxu0 0.0
    %v732 = vand.u32 %v252, 4294901760
    %v733 = vsub.f32 %v252, %v732
    %v734 = vand.u32 %v733, 4294901760
    %735 = vmatpush1.msra.mxu0 %v734
    %736 = vmatprep.subr.mxu0 0.0
    %v737 = vand.u32 %v253, 4294901760
    %v738 = vsub.f32 %v253, %v737
    %v739 = vand.u32 %v738, 4294901760
    %740 = vmatpush1.msra.mxu0 %v739
    %741 = vmatprep.subr.mxu0 0.0
    %v742 = vand.u32 %v254, 4294901760
    %v743 = vsub.f32 %v254, %v742
    %v744 = vand.u32 %v743, 4294901760
    %745 = vmatpush1.msra.mxu0 %v744
    %746 = vmatprep.subr.mxu0 0.0
    %v747 = vand.u32 %v255, 4294901760
    %v748 = vsub.f32 %v255, %v747
    %v749 = vand.u32 %v748, 4294901760
    %750 = vmatpush1.msra.mxu0 %v749
    %751 = vmatprep.subr.mxu0 0.0
    %v752 = vand.u32 %v256, 4294901760
    %v753 = vsub.f32 %v256, %v752
    %v754 = vand.u32 %v753, 4294901760
    %755 = vmatpush1.msra.mxu0 %v754
    %756 = vmatprep.subr.mxu0 0.0
    %v757 = vand.u32 %v257, 4294901760
    %v758 = vsub.f32 %v257, %v757
    %v759 = vand.u32 %v758, 4294901760
    %760 = vmatpush1.msra.mxu0 %v759
    %761 = vmatprep.subr.mxu0 0.0
    %v762 = vand.u32 %v258, 4294901760
    %v763 = vsub.f32 %v258, %v762
    %v764 = vand.u32 %v763, 4294901760
    %765 = vmatpush1.msra.mxu0 %v764
    %766 = vmatprep.subr.mxu0 0.0
    %v767 = vand.u32 %v259, 4294901760
    %v768 = vsub.f32 %v259, %v767
    %v769 = vand.u32 %v768, 4294901760
    %770 = vmatpush1.msra.mxu0 %v769
    %771 = vmatprep.subr.mxu0 0.0
    %v772 = vand.u32 %v260, 4294901760
    %v773 = vsub.f32 %v260, %v772
    %v774 = vand.u32 %v773, 4294901760
    %775 = vmatpush1.msra.mxu0 %v774
    %776 = vmatprep.subr.mxu0 0.0
    %777 = vmatpush1.msra.mxu0 0.0
    %778 = vmatprep.subr.mxu0 0.0
    %779 = vmatpush1.msra.mxu0 0.0
    %780 = vmatprep.subr.mxu0 0.0
    %781 = vmatpush1.msra.mxu0 0.0
    %782 = vmatprep.subr.mxu0 0.0
    %783 = vmatpush1.msra.mxu0 0.0
    %784 = vmatprep.subr.mxu0 0.0
    %785 = vmatpush1.msra.mxu0 0.0
    %786 = vmatprep.subr.mxu0 0.0
    %787 = vmatpush1.msra.mxu0 0.0
    %788 = vmatprep.subr.mxu0 0.0
    %789 = vmatpush1.msra.mxu0 0.0
    %790 = vmatprep.subr.mxu0 0.0
    %791 = vmatpush1.msra.mxu0 0.0
    %792 = vmatprep.subr.mxu0 0.0
    %793 = vmatpush1.msra.mxu0 0.0
    %794 = vmatprep.subr.mxu0 0.0
    %795 = vmatpush1.msra.mxu0 0.0
    %796 = vmatprep.subr.mxu0 0.0
    %797 = vmatpush1.msra.mxu0 0.0
    %798 = vmatprep.subr.mxu0 0.0
    %799 = vmatpush1.msra.mxu0 0.0
    %800 = vmatprep.subr.mxu0 0.0
    %801 = vmatpush1.msra.mxu0 0.0
    %802 = vmatprep.subr.mxu0 0.0
    %803 = vmatpush1.msra.mxu0 0.0
    %804 = vmatprep.subr.mxu0 0.0
    %805 = vmatpush1.msra.mxu0 0.0
    %806 = vmatprep.subr.mxu0 0.0
    %807 = vmatpush1.msra.mxu0 0.0
    %808 = vmatprep.mubr.f32.mxu0 0.0
    %v809 = vand.u32 %v228, 4294901760
    %810 = vmatmul.mubr.f32.gmra.mrb[0].mxu0 %v809
    %v811 = vpop.f32.mrb[0].mxu0
    %v812 = vadd.f32 %v693, %v811
    %v813 = vpop.f32.mrb[0].mxu0
    %814 = vdwg.mxu0
    %815 = vmatprep.subr.mxu0 0.0
    %v816 = vand.u32 %v245, 4294901760
    %817 = vmatpush1.msra.mxu0 %v816
    %818 = vmatprep.subr.mxu0 0.0
    %v819 = vand.u32 %v246, 4294901760
    %820 = vmatpush1.msra.mxu0 %v819
    %821 = vmatprep.subr.mxu0 0.0
    %v822 = vand.u32 %v247, 4294901760
    %823 = vmatpush1.msra.mxu0 %v822
    %824 = vmatprep.subr.mxu0 0.0
    %v825 = vand.u32 %v248, 4294901760
    %826 = vmatpush1.msra.mxu0 %v825
    %827 = vmatprep.subr.mxu0 0.0
    %v828 = vand.u32 %v249, 4294901760
    %829 = vmatpush1.msra.mxu0 %v828
    %830 = vmatprep.subr.mxu0 0.0
    %v831 = vand.u32 %v250, 4294901760
    %832 = vmatpush1.msra.mxu0 %v831
    %833 = vmatprep.subr.mxu0 0.0
    %v834 = vand.u32 %v251, 4294901760
    %835 = vmatpush1.msra.mxu0 %v834
    %836 = vmatprep.subr.mxu0 0.0
    %v837 = vand.u32 %v252, 4294901760
    %838 = vmatpush1.msra.mxu0 %v837
    %839 = vmatprep.subr.mxu0 0.0
    %v840 = vand.u32 %v253, 4294901760
    %841 = vmatpush1.msra.mxu0 %v840
    %842 = vmatprep.subr.mxu0 0.0
    %v843 = vand.u32 %v254, 4294901760
    %844 = vmatpush1.msra.mxu0 %v843
    %845 = vmatprep.subr.mxu0 0.0
    %v846 = vand.u32 %v255, 4294901760
    %847 = vmatpush1.msra.mxu0 %v846
    %848 = vmatprep.subr.mxu0 0.0
    %v849 = vand.u32 %v256, 4294901760
    %850 = vmatpush1.msra.mxu0 %v849
    %851 = vmatprep.subr.mxu0 0.0
    %v852 = vand.u32 %v257, 4294901760
    %853 = vmatpush1.msra.mxu0 %v852
    %854 = vmatprep.subr.mxu0 0.0
    %v855 = vand.u32 %v258, 4294901760
    %856 = vmatpush1.msra.mxu0 %v855
    %857 = vmatprep.subr.mxu0 0.0
    %v858 = vand.u32 %v259, 4294901760
    %859 = vmatpush1.msra.mxu0 %v858
    %860 = vmatprep.subr.mxu0 0.0
    %v861 = vand.u32 %v260, 4294901760
    %862 = vmatpush1.msra.mxu0 %v861
    %863 = vmatprep.subr.mxu0 0.0
    %864 = vmatpush1.msra.mxu0 0.0
    %865 = vmatprep.subr.mxu0 0.0
    %866 = vmatpush1.msra.mxu0 0.0
    %867 = vmatprep.subr.mxu0 0.0
    %868 = vmatpush1.msra.mxu0 0.0
    %869 = vmatprep.subr.mxu0 0.0
    %870 = vmatpush1.msra.mxu0 0.0
    %871 = vmatprep.subr.mxu0 0.0
    %872 = vmatpush1.msra.mxu0 0.0
    %873 = vmatprep.subr.mxu0 0.0
    %874 = vmatpush1.msra.mxu0 0.0
    %875 = vmatprep.subr.mxu0 0.0
    %876 = vmatpush1.msra.mxu0 0.0
    %877 = vmatprep.subr.mxu0 0.0
    %878 = vmatpush1.msra.mxu0 0.0
    %879 = vmatprep.subr.mxu0 0.0
    %880 = vmatpush1.msra.mxu0 0.0
    %881 = vmatprep.subr.mxu0 0.0
    %882 = vmatpush1.msra.mxu0 0.0
    %883 = vmatprep.subr.mxu0 0.0
    %884 = vmatpush1.msra.mxu0 0.0
    %885 = vmatprep.subr.mxu0 0.0
    %886 = vmatpush1.msra.mxu0 0.0
    %887 = vmatprep.subr.mxu0 0.0
    %888 = vmatpush1.msra.mxu0 0.0
    %889 = vmatprep.subr.mxu0 0.0
    %890 = vmatpush1.msra.mxu0 0.0
    %891 = vmatprep.subr.mxu0 0.0
    %892 = vmatpush1.msra.mxu0 0.0
    %893 = vmatprep.subr.mxu0 0.0
    %894 = vmatpush1.msra.mxu0 0.0
    %895 = vmatprep.mubr.f32.mxu0 0.0
    %v896 = vand.u32 %v228, 4294901760
    %897 = vmatmul.mubr.f32.gmra.mrb[0].mxu0 %v896
    %v898 = vpop.f32.mrb[0].mxu0
    %v899 = vadd.f32 %v812, %v898
    %v900 = vpop.f32.mrb[0].mxu0
    %901 = vdwg.mxu0
    %902 = vmatprep.subr.mxu0 0.0
    %v903 = vand.u32 %v229, 4294901760
    %904 = vmatpush1.msra.mxu0 %v903
    %905 = vmatprep.subr.mxu0 0.0
    %v906 = vand.u32 %v230, 4294901760
    %907 = vmatpush1.msra.mxu0 %v906
    %908 = vmatprep.subr.mxu0 0.0
    %v909 = vand.u32 %v231, 4294901760
    %910 = vmatpush1.msra.mxu0 %v909
    %911 = vmatprep.subr.mxu0 0.0
    %v912 = vand.u32 %v232, 4294901760
    %913 = vmatpush1.msra.mxu0 %v912
    %914 = vmatprep.subr.mxu0 0.0
    %v915 = vand.u32 %v233, 4294901760
    %916 = vmatpush1.msra.mxu0 %v915
    %917 = vmatprep.subr.mxu0 0.0
    %v918 = vand.u32 %v234, 4294901760
    %919 = vmatpush1.msra.mxu0 %v918
    %920 = vmatprep.subr.mxu0 0.0
    %v921 = vand.u32 %v235, 4294901760
    %922 = vmatpush1.msra.mxu0 %v921
    %923 = vmatprep.subr.mxu0 0.0
    %v924 = vand.u32 %v236, 4294901760
    %925 = vmatpush1.msra.mxu0 %v924
    %926 = vmatprep.subr.mxu0 0.0
    %v927 = vand.u32 %v237, 4294901760
    %928 = vmatpush1.msra.mxu0 %v927
    %929 = vmatprep.subr.mxu0 0.0
    %v930 = vand.u32 %v238, 4294901760
    %931 = vmatpush1.msra.mxu0 %v930
    %932 = vmatprep.subr.mxu0 0.0
    %v933 = vand.u32 %v239, 4294901760
    %934 = vmatpush1.msra.mxu0 %v933
    %935 = vmatprep.subr.mxu0 0.0
    %v936 = vand.u32 %v240, 4294901760
    %937 = vmatpush1.msra.mxu0 %v936
    %938 = vmatprep.subr.mxu0 0.0
    %v939 = vand.u32 %v241, 4294901760
    %940 = vmatpush1.msra.mxu0 %v939
    %941 = vmatprep.subr.mxu0 0.0
    %v942 = vand.u32 %v242, 4294901760
    %943 = vmatpush1.msra.mxu0 %v942
    %944 = vmatprep.subr.mxu0 0.0
    %v945 = vand.u32 %v243, 4294901760
    %946 = vmatpush1.msra.mxu0 %v945
    %947 = vmatprep.subr.mxu0 0.0
    %v948 = vand.u32 %v244, 4294901760
    %949 = vmatpush1.msra.mxu0 %v948
    %950 = vmatprep.subr.mxu0 0.0
    %951 = vmatpush1.msra.mxu0 0.0
    %952 = vmatprep.subr.mxu0 0.0
    %953 = vmatpush1.msra.mxu0 0.0
    %954 = vmatprep.subr.mxu0 0.0
    %955 = vmatpush1.msra.mxu0 0.0
    %956 = vmatprep.subr.mxu0 0.0
    %957 = vmatpush1.msra.mxu0 0.0
    %958 = vmatprep.subr.mxu0 0.0
    %959 = vmatpush1.msra.mxu0 0.0
    %960 = vmatprep.subr.mxu0 0.0
    %961 = vmatpush1.msra.mxu0 0.0
    %962 = vmatprep.subr.mxu0 0.0
    %963 = vmatpush1.msra.mxu0 0.0
    %964 = vmatprep.subr.mxu0 0.0
    %965 = vmatpush1.msra.mxu0 0.0
    %966 = vmatprep.subr.mxu0 0.0
    %967 = vmatpush1.msra.mxu0 0.0
    %968 = vmatprep.subr.mxu0 0.0
    %969 = vmatpush1.msra.mxu0 0.0
    %970 = vmatprep.subr.mxu0 0.0
    %971 = vmatpush1.msra.mxu0 0.0
    %972 = vmatprep.subr.mxu0 0.0
    %973 = vmatpush1.msra.mxu0 0.0
    %974 = vmatprep.subr.mxu0 0.0
    %975 = vmatpush1.msra.mxu0 0.0
    %976 = vmatprep.subr.mxu0 0.0
    %977 = vmatpush1.msra.mxu0 0.0
    %978 = vmatprep.subr.mxu0 0.0
    %979 = vmatpush1.msra.mxu0 0.0
    %980 = vmatprep.subr.mxu0 0.0
    %981 = vmatpush1.msra.mxu0 0.0
    %982 = vmatprep.mubr.f32.mxu0 0.0
    %v983 = vand.u32 %v124, 4294901760
    %v984 = vsub.f32 %v124, %v983
    %v985 = vand.u32 %v984, 4294901760
    %v986 = vsub.f32 %v984, %v985
    %v987 = vand.u32 %v986, 4294901760
    %988 = vmatmul.mubr.f32.gmra.mrb[0].mxu0 %v987
    %v989 = vpop.f32.mrb[0].mxu0
    %v990 = vadd.f32 %v899, %v989
    %v991 = vpop.f32.mrb[0].mxu0
    %992 = vdwg.mxu0
    %993 = vmatprep.subr.mxu0 0.0
    %v994 = vand.u32 %v229, 4294901760
    %v995 = vsub.f32 %v229, %v994
    %v996 = vand.u32 %v995, 4294901760
    %v997 = vsub.f32 %v995, %v996
    %v998 = vand.u32 %v997, 4294901760
    %999 = vmatpush1.msra.mxu0 %v998
    %1000 = vmatprep.subr.mxu0 0.0
    %v1001 = vand.u32 %v230, 4294901760
    %v1002 = vsub.f32 %v230, %v1001
    %v1003 = vand.u32 %v1002, 4294901760
    %v1004 = vsub.f32 %v1002, %v1003
    %v1005 = vand.u32 %v1004, 4294901760
    %1006 = vmatpush1.msra.mxu0 %v1005
    %1007 = vmatprep.subr.mxu0 0.0
    %v1008 = vand.u32 %v231, 4294901760
    %v1009 = vsub.f32 %v231, %v1008
    %v1010 = vand.u32 %v1009, 4294901760
    %v1011 = vsub.f32 %v1009, %v1010
    %v1012 = vand.u32 %v1011, 4294901760
    %1013 = vmatpush1.msra.mxu0 %v1012
    %1014 = vmatprep.subr.mxu0 0.0
    %v1015 = vand.u32 %v232, 4294901760
    %v1016 = vsub.f32 %v232, %v1015
    %v1017 = vand.u32 %v1016, 4294901760
    %v1018 = vsub.f32 %v1016, %v1017
    %v1019 = vand.u32 %v1018, 4294901760
    %1020 = vmatpush1.msra.mxu0 %v1019
    %1021 = vmatprep.subr.mxu0 0.0
    %v1022 = vand.u32 %v233, 4294901760
    %v1023 = vsub.f32 %v233, %v1022
    %v1024 = vand.u32 %v1023, 4294901760
    %v1025 = vsub.f32 %v1023, %v1024
    %v1026 = vand.u32 %v1025, 4294901760
    %1027 = vmatpush1.msra.mxu0 %v1026
    %1028 = vmatprep.subr.mxu0 0.0
    %v1029 = vand.u32 %v234, 4294901760
    %v1030 = vsub.f32 %v234, %v1029
    %v1031 = vand.u32 %v1030, 4294901760
    %v1032 = vsub.f32 %v1030, %v1031
    %v1033 = vand.u32 %v1032, 4294901760
    %1034 = vmatpush1.msra.mxu0 %v1033
    %1035 = vmatprep.subr.mxu0 0.0
    %v1036 = vand.u32 %v235, 4294901760
    %v1037 = vsub.f32 %v235, %v1036
    %v1038 = vand.u32 %v1037, 4294901760
    %v1039 = vsub.f32 %v1037, %v1038
    %v1040 = vand.u32 %v1039, 4294901760
    %1041 = vmatpush1.msra.mxu0 %v1040
    %1042 = vmatprep.subr.mxu0 0.0
    %v1043 = vand.u32 %v236, 4294901760
    %v1044 = vsub.f32 %v236, %v1043
    %v1045 = vand.u32 %v1044, 4294901760
    %v1046 = vsub.f32 %v1044, %v1045
    %v1047 = vand.u32 %v1046, 4294901760
    %1048 = vmatpush1.msra.mxu0 %v1047
    %1049 = vmatprep.subr.mxu0 0.0
    %v1050 = vand.u32 %v237, 4294901760
    %v1051 = vsub.f32 %v237, %v1050
    %v1052 = vand.u32 %v1051, 4294901760
    %v1053 = vsub.f32 %v1051, %v1052
    %v1054 = vand.u32 %v1053, 4294901760
    %1055 = vmatpush1.msra.mxu0 %v1054
    %1056 = vmatprep.subr.mxu0 0.0
    %v1057 = vand.u32 %v238, 4294901760
    %v1058 = vsub.f32 %v238, %v1057
    %v1059 = vand.u32 %v1058, 4294901760
    %v1060 = vsub.f32 %v1058, %v1059
    %v1061 = vand.u32 %v1060, 4294901760
    %1062 = vmatpush1.msra.mxu0 %v1061
    %1063 = vmatprep.subr.mxu0 0.0
    %v1064 = vand.u32 %v239, 4294901760
    %v1065 = vsub.f32 %v239, %v1064
    %v1066 = vand.u32 %v1065, 4294901760
    %v1067 = vsub.f32 %v1065, %v1066
    %v1068 = vand.u32 %v1067, 4294901760
    %1069 = vmatpush1.msra.mxu0 %v1068
    %1070 = vmatprep.subr.mxu0 0.0
    %v1071 = vand.u32 %v240, 4294901760
    %v1072 = vsub.f32 %v240, %v1071
    %v1073 = vand.u32 %v1072, 4294901760
    %v1074 = vsub.f32 %v1072, %v1073
    %v1075 = vand.u32 %v1074, 4294901760
    %1076 = vmatpush1.msra.mxu0 %v1075
    %1077 = vmatprep.subr.mxu0 0.0
    %v1078 = vand.u32 %v241, 4294901760
    %v1079 = vsub.f32 %v241, %v1078
    %v1080 = vand.u32 %v1079, 4294901760
    %v1081 = vsub.f32 %v1079, %v1080
    %v1082 = vand.u32 %v1081, 4294901760
    %1083 = vmatpush1.msra.mxu0 %v1082
    %1084 = vmatprep.subr.mxu0 0.0
    %v1085 = vand.u32 %v242, 4294901760
    %v1086 = vsub.f32 %v242, %v1085
    %v1087 = vand.u32 %v1086, 4294901760
    %v1088 = vsub.f32 %v1086, %v1087
    %v1089 = vand.u32 %v1088, 4294901760
    %1090 = vmatpush1.msra.mxu0 %v1089
    %1091 = vmatprep.subr.mxu0 0.0
    %v1092 = vand.u32 %v243, 4294901760
    %v1093 = vsub.f32 %v243, %v1092
    %v1094 = vand.u32 %v1093, 4294901760
    %v1095 = vsub.f32 %v1093, %v1094
    %v1096 = vand.u32 %v1095, 4294901760
    %1097 = vmatpush1.msra.mxu0 %v1096
    %1098 = vmatprep.subr.mxu0 0.0
    %v1099 = vand.u32 %v244, 4294901760
    %v1100 = vsub.f32 %v244, %v1099
    %v1101 = vand.u32 %v1100, 4294901760
    %v1102 = vsub.f32 %v1100, %v1101
    %v1103 = vand.u32 %v1102, 4294901760
    %1104 = vmatpush1.msra.mxu0 %v1103
    %1105 = vmatprep.subr.mxu0 0.0
    %1106 = vmatpush1.msra.mxu0 0.0
    %1107 = vmatprep.subr.mxu0 0.0
    %1108 = vmatpush1.msra.mxu0 0.0
    %1109 = vmatprep.subr.mxu0 0.0
    %1110 = vmatpush1.msra.mxu0 0.0
    %1111 = vmatprep.subr.mxu0 0.0
    %1112 = vmatpush1.msra.mxu0 0.0
    %1113 = vmatprep.subr.mxu0 0.0
    %1114 = vmatpush1.msra.mxu0 0.0
    %1115 = vmatprep.subr.mxu0 0.0
    %1116 = vmatpush1.msra.mxu0 0.0
    %1117 = vmatprep.subr.mxu0 0.0
    %1118 = vmatpush1.msra.mxu0 0.0
    %1119 = vmatprep.subr.mxu0 0.0
    %1120 = vmatpush1.msra.mxu0 0.0
    %1121 = vmatprep.subr.mxu0 0.0
    %1122 = vmatpush1.msra.mxu0 0.0
    %1123 = vmatprep.subr.mxu0 0.0
    %1124 = vmatpush1.msra.mxu0 0.0
    %1125 = vmatprep.subr.mxu0 0.0
    %1126 = vmatpush1.msra.mxu0 0.0
    %1127 = vmatprep.subr.mxu0 0.0
    %1128 = vmatpush1.msra.mxu0 0.0
    %1129 = vmatprep.subr.mxu0 0.0
    %1130 = vmatpush1.msra.mxu0 0.0
    %1131 = vmatprep.subr.mxu0 0.0
    %1132 = vmatpush1.msra.mxu0 0.0
    %1133 = vmatprep.subr.mxu0 0.0
    %1134 = vmatpush1.msra.mxu0 0.0
    %1135 = vmatprep.subr.mxu0 0.0
    %1136 = vmatpush1.msra.mxu0 0.0
    %1137 = vmatprep.mubr.f32.mxu0 0.0
    %v1138 = vand.u32 %v124, 4294901760
    %1139 = vmatmul.mubr.f32.gmra.mrb[0].mxu0 %v1138
    %v1140 = vpop.f32.mrb[0].mxu0
    %v1141 = vadd.f32 %v990, %v1140
    %v1142 = vpop.f32.mrb[0].mxu0
    %1143 = vdwg.mxu0
    %1144 = vmatprep.subr.mxu0 0.0
    %v1145 = vand.u32 %v229, 4294901760
    %v1146 = vsub.f32 %v229, %v1145
    %1147 = vmatpush1.msra.mxu0 %v1146
    %1148 = vmatprep.subr.mxu0 0.0
    %v1149 = vand.u32 %v230, 4294901760
    %v1150 = vsub.f32 %v230, %v1149
    %1151 = vmatpush1.msra.mxu0 %v1150
    %1152 = vmatprep.subr.mxu0 0.0
    %v1153 = vand.u32 %v231, 4294901760
    %v1154 = vsub.f32 %v231, %v1153
    %1155 = vmatpush1.msra.mxu0 %v1154
    %1156 = vmatprep.subr.mxu0 0.0
    %v1157 = vand.u32 %v232, 4294901760
    %v1158 = vsub.f32 %v232, %v1157
    %1159 = vmatpush1.msra.mxu0 %v1158
    %1160 = vmatprep.subr.mxu0 0.0
    %v1161 = vand.u32 %v233, 4294901760
    %v1162 = vsub.f32 %v233, %v1161
    %1163 = vmatpush1.msra.mxu0 %v1162
    %1164 = vmatprep.subr.mxu0 0.0
    %v1165 = vand.u32 %v234, 4294901760
    %v1166 = vsub.f32 %v234, %v1165
    %1167 = vmatpush1.msra.mxu0 %v1166
    %1168 = vmatprep.subr.mxu0 0.0
    %v1169 = vand.u32 %v235, 4294901760
    %v1170 = vsub.f32 %v235, %v1169
    %1171 = vmatpush1.msra.mxu0 %v1170
    %1172 = vmatprep.subr.mxu0 0.0
    %v1173 = vand.u32 %v236, 4294901760
    %v1174 = vsub.f32 %v236, %v1173
    %1175 = vmatpush1.msra.mxu0 %v1174
    %1176 = vmatprep.subr.mxu0 0.0
    %v1177 = vand.u32 %v237, 4294901760
    %v1178 = vsub.f32 %v237, %v1177
    %1179 = vmatpush1.msra.mxu0 %v1178
    %1180 = vmatprep.subr.mxu0 0.0
    %v1181 = vand.u32 %v238, 4294901760
    %v1182 = vsub.f32 %v238, %v1181
    %1183 = vmatpush1.msra.mxu0 %v1182
    %1184 = vmatprep.subr.mxu0 0.0
    %v1185 = vand.u32 %v239, 4294901760
    %v1186 = vsub.f32 %v239, %v1185
    %1187 = vmatpush1.msra.mxu0 %v1186
    %1188 = vmatprep.subr.mxu0 0.0
    %v1189 = vand.u32 %v240, 4294901760
    %v1190 = vsub.f32 %v240, %v1189
    %1191 = vmatpush1.msra.mxu0 %v1190
    %1192 = vmatprep.subr.mxu0 0.0
    %v1193 = vand.u32 %v241, 4294901760
    %v1194 = vsub.f32 %v241, %v1193
    %1195 = vmatpush1.msra.mxu0 %v1194
    %1196 = vmatprep.subr.mxu0 0.0
    %v1197 = vand.u32 %v242, 4294901760
    %v1198 = vsub.f32 %v242, %v1197
    %1199 = vmatpush1.msra.mxu0 %v1198
    %1200 = vmatprep.subr.mxu0 0.0
    %v1201 = vand.u32 %v243, 4294901760
    %v1202 = vsub.f32 %v243, %v1201
    %1203 = vmatpush1.msra.mxu0 %v1202
    %1204 = vmatprep.subr.mxu0 0.0
    %v1205 = vand.u32 %v244, 4294901760
    %v1206 = vsub.f32 %v244, %v1205
    %1207 = vmatpush1.msra.mxu0 %v1206
    %1208 = vmatprep.subr.mxu0 0.0
    %1209 = vmatpush1.msra.mxu0 0.0
    %1210 = vmatprep.subr.mxu0 0.0
    %1211 = vmatpush1.msra.mxu0 0.0
    %1212 = vmatprep.subr.mxu0 0.0
    %1213 = vmatpush1.msra.mxu0 0.0
    %1214 = vmatprep.subr.mxu0 0.0
    %1215 = vmatpush1.msra.mxu0 0.0
    %1216 = vmatprep.subr.mxu0 0.0
    %1217 = vmatpush1.msra.mxu0 0.0
    %1218 = vmatprep.subr.mxu0 0.0
    %1219 = vmatpush1.msra.mxu0 0.0
    %1220 = vmatprep.subr.mxu0 0.0
    %1221 = vmatpush1.msra.mxu0 0.0
    %1222 = vmatprep.subr.mxu0 0.0
    %1223 = vmatpush1.msra.mxu0 0.0
    %1224 = vmatprep.subr.mxu0 0.0
    %1225 = vmatpush1.msra.mxu0 0.0
    %1226 = vmatprep.subr.mxu0 0.0
    %1227 = vmatpush1.msra.mxu0 0.0
    %1228 = vmatprep.subr.mxu0 0.0
    %1229 = vmatpush1.msra.mxu0 0.0
    %1230 = vmatprep.subr.mxu0 0.0
    %1231 = vmatpush1.msra.mxu0 0.0
    %1232 = vmatprep.subr.mxu0 0.0
    %1233 = vmatpush1.msra.mxu0 0.0
    %1234 = vmatprep.subr.mxu0 0.0
    %1235 = vmatpush1.msra.mxu0 0.0
    %1236 = vmatprep.subr.mxu0 0.0
    %1237 = vmatpush1.msra.mxu0 0.0
    %1238 = vmatprep.subr.mxu0 0.0
    %1239 = vmatpush1.msra.mxu0 0.0
    %1240 = vmatprep.mubr.f32.mxu0 0.0
    %v1241 = vand.u32 %v124, 4294901760
    %v1242 = vsub.f32 %v124, %v1241
    %1243 = vmatmul.mubr.f32.gmra.mrb[0].mxu0 %v1242
    %v1244 = vpop.f32.mrb[0].mxu0
    %v1245 = vadd.f32 %v1141, %v1244
    %v1246 = vpop.f32.mrb[0].mxu0
    %1247 = vdwg.mxu0
    %1248 = vmatprep.subr.mxu0 0.0
    %v1249 = vand.u32 %v229, 4294901760
    %1250 = vmatpush1.msra.mxu0 %v1249
    %1251 = vmatprep.subr.mxu0 0.0
    %v1252 = vand.u32 %v230, 4294901760
    %1253 = vmatpush1.msra.mxu0 %v1252
    %1254 = vmatprep.subr.mxu0 0.0
    %v1255 = vand.u32 %v231, 4294901760
    %1256 = vmatpush1.msra.mxu0 %v1255
    %1257 = vmatprep.subr.mxu0 0.0
    %v1258 = vand.u32 %v232, 4294901760
    %1259 = vmatpush1.msra.mxu0 %v1258
    %1260 = vmatprep.subr.mxu0 0.0
    %v1261 = vand.u32 %v233, 4294901760
    %1262 = vmatpush1.msra.mxu0 %v1261
    %1263 = vmatprep.subr.mxu0 0.0
    %v1264 = vand.u32 %v234, 4294901760
    %1265 = vmatpush1.msra.mxu0 %v1264
    %1266 = vmatprep.subr.mxu0 0.0
    %v1267 = vand.u32 %v235, 4294901760
    %1268 = vmatpush1.msra.mxu0 %v1267
    %1269 = vmatprep.subr.mxu0 0.0
    %v1270 = vand.u32 %v236, 4294901760
    %1271 = vmatpush1.msra.mxu0 %v1270
    %1272 = vmatprep.subr.mxu0 0.0
    %v1273 = vand.u32 %v237, 4294901760
    %1274 = vmatpush1.msra.mxu0 %v1273
    %1275 = vmatprep.subr.mxu0 0.0
    %v1276 = vand.u32 %v238, 4294901760
    %1277 = vmatpush1.msra.mxu0 %v1276
    %1278 = vmatprep.subr.mxu0 0.0
    %v1279 = vand.u32 %v239, 4294901760
    %1280 = vmatpush1.msra.mxu0 %v1279
    %1281 = vmatprep.subr.mxu0 0.0
    %v1282 = vand.u32 %v240, 4294901760
    %1283 = vmatpush1.msra.mxu0 %v1282
    %1284 = vmatprep.subr.mxu0 0.0
    %v1285 = vand.u32 %v241, 4294901760
    %1286 = vmatpush1.msra.mxu0 %v1285
    %1287 = vmatprep.subr.mxu0 0.0
    %v1288 = vand.u32 %v242, 4294901760
    %1289 = vmatpush1.msra.mxu0 %v1288
    %1290 = vmatprep.subr.mxu0 0.0
    %v1291 = vand.u32 %v243, 4294901760
    %1292 = vmatpush1.msra.mxu0 %v1291
    %1293 = vmatprep.subr.mxu0 0.0
    %v1294 = vand.u32 %v244, 4294901760
    %1295 = vmatpush1.msra.mxu0 %v1294
    %1296 = vmatprep.subr.mxu0 0.0
    %1297 = vmatpush1.msra.mxu0 0.0
    %1298 = vmatprep.subr.mxu0 0.0
    %1299 = vmatpush1.msra.mxu0 0.0
    %1300 = vmatprep.subr.mxu0 0.0
    %1301 = vmatpush1.msra.mxu0 0.0
    %1302 = vmatprep.subr.mxu0 0.0
    %1303 = vmatpush1.msra.mxu0 0.0
    %1304 = vmatprep.subr.mxu0 0.0
    %1305 = vmatpush1.msra.mxu0 0.0
    %1306 = vmatprep.subr.mxu0 0.0
    %1307 = vmatpush1.msra.mxu0 0.0
    %1308 = vmatprep.subr.mxu0 0.0
    %1309 = vmatpush1.msra.mxu0 0.0
    %1310 = vmatprep.subr.mxu0 0.0
    %1311 = vmatpush1.msra.mxu0 0.0
    %1312 = vmatprep.subr.mxu0 0.0
    %1313 = vmatpush1.msra.mxu0 0.0
    %1314 = vmatprep.subr.mxu0 0.0
    %1315 = vmatpush1.msra.mxu0 0.0
    %1316 = vmatprep.subr.mxu0 0.0
    %1317 = vmatpush1.msra.mxu0 0.0
    %1318 = vmatprep.subr.mxu0 0.0
    %1319 = vmatpush1.msra.mxu0 0.0
    %1320 = vmatprep.subr.mxu0 0.0
    %1321 = vmatpush1.msra.mxu0 0.0
    %1322 = vmatprep.subr.mxu0 0.0
    %1323 = vmatpush1.msra.mxu0 0.0
    %1324 = vmatprep.subr.mxu0 0.0
    %1325 = vmatpush1.msra.mxu0 0.0
    %1326 = vmatprep.subr.mxu0 0.0
    %1327 = vmatpush1.msra.mxu0 0.0
    %1328 = vmatprep.mubr.f32.mxu0 0.0
    %v1329 = vand.u32 %v124, 4294901760
    %v1330 = vsub.f32 %v124, %v1329
    %v1331 = vand.u32 %v1330, 4294901760
    %1332 = vmatmul.mubr.f32.gmra.mrb[0].mxu0 %v1331
    %v1333 = vpop.f32.mrb[0].mxu0
    %v1334 = vadd.f32 %v1245, %v1333
    %v1335 = vpop.f32.mrb[0].mxu0
    %1336 = vdwg.mxu0
    %1337 = vmatprep.subr.mxu0 0.0
    %v1338 = vand.u32 %v229, 4294901760
    %v1339 = vsub.f32 %v229, %v1338
    %v1340 = vand.u32 %v1339, 4294901760
    %1341 = vmatpush1.msra.mxu0 %v1340
    %1342 = vmatprep.subr.mxu0 0.0
    %v1343 = vand.u32 %v230, 4294901760
    %v1344 = vsub.f32 %v230, %v1343
    %v1345 = vand.u32 %v1344, 4294901760
    %1346 = vmatpush1.msra.mxu0 %v1345
    %1347 = vmatprep.subr.mxu0 0.0
    %v1348 = vand.u32 %v231, 4294901760
    %v1349 = vsub.f32 %v231, %v1348
    %v1350 = vand.u32 %v1349, 4294901760
    %1351 = vmatpush1.msra.mxu0 %v1350
    %1352 = vmatprep.subr.mxu0 0.0
    %v1353 = vand.u32 %v232, 4294901760
    %v1354 = vsub.f32 %v232, %v1353
    %v1355 = vand.u32 %v1354, 4294901760
    %1356 = vmatpush1.msra.mxu0 %v1355
    %1357 = vmatprep.subr.mxu0 0.0
    %v1358 = vand.u32 %v233, 4294901760
    %v1359 = vsub.f32 %v233, %v1358
    %v1360 = vand.u32 %v1359, 4294901760
    %1361 = vmatpush1.msra.mxu0 %v1360
    %1362 = vmatprep.subr.mxu0 0.0
    %v1363 = vand.u32 %v234, 4294901760
    %v1364 = vsub.f32 %v234, %v1363
    %v1365 = vand.u32 %v1364, 4294901760
    %1366 = vmatpush1.msra.mxu0 %v1365
    %1367 = vmatprep.subr.mxu0 0.0
    %v1368 = vand.u32 %v235, 4294901760
    %v1369 = vsub.f32 %v235, %v1368
    %v1370 = vand.u32 %v1369, 4294901760
    %1371 = vmatpush1.msra.mxu0 %v1370
    %1372 = vmatprep.subr.mxu0 0.0
    %v1373 = vand.u32 %v236, 4294901760
    %v1374 = vsub.f32 %v236, %v1373
    %v1375 = vand.u32 %v1374, 4294901760
    %1376 = vmatpush1.msra.mxu0 %v1375
    %1377 = vmatprep.subr.mxu0 0.0
    %v1378 = vand.u32 %v237, 4294901760
    %v1379 = vsub.f32 %v237, %v1378
    %v1380 = vand.u32 %v1379, 4294901760
    %1381 = vmatpush1.msra.mxu0 %v1380
    %1382 = vmatprep.subr.mxu0 0.0
    %v1383 = vand.u32 %v238, 4294901760
    %v1384 = vsub.f32 %v238, %v1383
    %v1385 = vand.u32 %v1384, 4294901760
    %1386 = vmatpush1.msra.mxu0 %v1385
    %1387 = vmatprep.subr.mxu0 0.0
    %v1388 = vand.u32 %v239, 4294901760
    %v1389 = vsub.f32 %v239, %v1388
    %v1390 = vand.u32 %v1389, 4294901760
    %1391 = vmatpush1.msra.mxu0 %v1390
    %1392 = vmatprep.subr.mxu0 0.0
    %v1393 = vand.u32 %v240, 4294901760
    %v1394 = vsub.f32 %v240, %v1393
    %v1395 = vand.u32 %v1394, 4294901760
    %1396 = vmatpush1.msra.mxu0 %v1395
    %1397 = vmatprep.subr.mxu0 0.0
    %v1398 = vand.u32 %v241, 4294901760
    %v1399 = vsub.f32 %v241, %v1398
    %v1400 = vand.u32 %v1399, 4294901760
    %1401 = vmatpush1.msra.mxu0 %v1400
    %1402 = vmatprep.subr.mxu0 0.0
    %v1403 = vand.u32 %v242, 4294901760
    %v1404 = vsub.f32 %v242, %v1403
    %v1405 = vand.u32 %v1404, 4294901760
    %1406 = vmatpush1.msra.mxu0 %v1405
    %1407 = vmatprep.subr.mxu0 0.0
    %v1408 = vand.u32 %v243, 4294901760
    %v1409 = vsub.f32 %v243, %v1408
    %v1410 = vand.u32 %v1409, 4294901760
    %1411 = vmatpush1.msra.mxu0 %v1410
    %1412 = vmatprep.subr.mxu0 0.0
    %v1413 = vand.u32 %v244, 4294901760
    %v1414 = vsub.f32 %v244, %v1413
    %v1415 = vand.u32 %v1414, 4294901760
    %1416 = vmatpush1.msra.mxu0 %v1415
    %1417 = vmatprep.subr.mxu0 0.0
    %1418 = vmatpush1.msra.mxu0 0.0
    %1419 = vmatprep.subr.mxu0 0.0
    %1420 = vmatpush1.msra.mxu0 0.0
    %1421 = vmatprep.subr.mxu0 0.0
    %1422 = vmatpush1.msra.mxu0 0.0
    %1423 = vmatprep.subr.mxu0 0.0
    %1424 = vmatpush1.msra.mxu0 0.0
    %1425 = vmatprep.subr.mxu0 0.0
    %1426 = vmatpush1.msra.mxu0 0.0
    %1427 = vmatprep.subr.mxu0 0.0
    %1428 = vmatpush1.msra.mxu0 0.0
    %1429 = vmatprep.subr.mxu0 0.0
    %1430 = vmatpush1.msra.mxu0 0.0
    %1431 = vmatprep.subr.mxu0 0.0
    %1432 = vmatpush1.msra.mxu0 0.0
    %1433 = vmatprep.subr.mxu0 0.0
    %1434 = vmatpush1.msra.mxu0 0.0
    %1435 = vmatprep.subr.mxu0 0.0
    %1436 = vmatpush1.msra.mxu0 0.0
    %1437 = vmatprep.subr.mxu0 0.0
    %1438 = vmatpush1.msra.mxu0 0.0
    %1439 = vmatprep.subr.mxu0 0.0
    %1440 = vmatpush1.msra.mxu0 0.0
    %1441 = vmatprep.subr.mxu0 0.0
    %1442 = vmatpush1.msra.mxu0 0.0
    %1443 = vmatprep.subr.mxu0 0.0
    %1444 = vmatpush1.msra.mxu0 0.0
    %1445 = vmatprep.subr.mxu0 0.0
    %1446 = vmatpush1.msra.mxu0 0.0
    %1447 = vmatprep.subr.mxu0 0.0
    %1448 = vmatpush1.msra.mxu0 0.0
    %1449 = vmatprep.mubr.f32.mxu0 0.0
    %v1450 = vand.u32 %v124, 4294901760
    %1451 = vmatmul.mubr.f32.gmra.mrb[0].mxu0 %v1450
    %v1452 = vpop.f32.mrb[0].mxu0
    %v1453 = vadd.f32 %v1334, %v1452
    %v1454 = vpop.f32.mrb[0].mxu0
    %1455 = vdwg.mxu0
    %1456 = vmatprep.subr.mxu0 0.0
    %v1457 = vand.u32 %v229, 4294901760
    %1458 = vmatpush1.msra.mxu0 %v1457
    %1459 = vmatprep.subr.mxu0 0.0
    %v1460 = vand.u32 %v230, 4294901760
    %1461 = vmatpush1.msra.mxu0 %v1460
    %1462 = vmatprep.subr.mxu0 0.0
    %v1463 = vand.u32 %v231, 4294901760
    %1464 = vmatpush1.msra.mxu0 %v1463
    %1465 = vmatprep.subr.mxu0 0.0
    %v1466 = vand.u32 %v232, 4294901760
    %1467 = vmatpush1.msra.mxu0 %v1466
    %1468 = vmatprep.subr.mxu0 0.0
    %v1469 = vand.u32 %v233, 4294901760
    %1470 = vmatpush1.msra.mxu0 %v1469
    %1471 = vmatprep.subr.mxu0 0.0
    %v1472 = vand.u32 %v234, 4294901760
    %1473 = vmatpush1.msra.mxu0 %v1472
    %1474 = vmatprep.subr.mxu0 0.0
    %v1475 = vand.u32 %v235, 4294901760
    %1476 = vmatpush1.msra.mxu0 %v1475
    %1477 = vmatprep.subr.mxu0 0.0
    %v1478 = vand.u32 %v236, 4294901760
    %1479 = vmatpush1.msra.mxu0 %v1478
    %1480 = vmatprep.subr.mxu0 0.0
    %v1481 = vand.u32 %v237, 4294901760
    %1482 = vmatpush1.msra.mxu0 %v1481
    %1483 = vmatprep.subr.mxu0 0.0
    %v1484 = vand.u32 %v238, 4294901760
    %1485 = vmatpush1.msra.mxu0 %v1484
    %1486 = vmatprep.subr.mxu0 0.0
    %v1487 = vand.u32 %v239, 4294901760
    %1488 = vmatpush1.msra.mxu0 %v1487
    %1489 = vmatprep.subr.mxu0 0.0
    %v1490 = vand.u32 %v240, 4294901760
    %1491 = vmatpush1.msra.mxu0 %v1490
    %1492 = vmatprep.subr.mxu0 0.0
    %v1493 = vand.u32 %v241, 4294901760
    %1494 = vmatpush1.msra.mxu0 %v1493
    %1495 = vmatprep.subr.mxu0 0.0
    %v1496 = vand.u32 %v242, 4294901760
    %1497 = vmatpush1.msra.mxu0 %v1496
    %1498 = vmatprep.subr.mxu0 0.0
    %v1499 = vand.u32 %v243, 4294901760
    %1500 = vmatpush1.msra.mxu0 %v1499
    %1501 = vmatprep.subr.mxu0 0.0
    %v1502 = vand.u32 %v244, 4294901760
    %1503 = vmatpush1.msra.mxu0 %v1502
    %1504 = vmatprep.subr.mxu0 0.0
    %1505 = vmatpush1.msra.mxu0 0.0
    %1506 = vmatprep.subr.mxu0 0.0
    %1507 = vmatpush1.msra.mxu0 0.0
    %1508 = vmatprep.subr.mxu0 0.0
    %1509 = vmatpush1.msra.mxu0 0.0
    %1510 = vmatprep.subr.mxu0 0.0
    %1511 = vmatpush1.msra.mxu0 0.0
    %1512 = vmatprep.subr.mxu0 0.0
    %1513 = vmatpush1.msra.mxu0 0.0
    %1514 = vmatprep.subr.mxu0 0.0
    %1515 = vmatpush1.msra.mxu0 0.0
    %1516 = vmatprep.subr.mxu0 0.0
    %1517 = vmatpush1.msra.mxu0 0.0
    %1518 = vmatprep.subr.mxu0 0.0
    %1519 = vmatpush1.msra.mxu0 0.0
    %1520 = vmatprep.subr.mxu0 0.0
    %1521 = vmatpush1.msra.mxu0 0.0
    %1522 = vmatprep.subr.mxu0 0.0
    %1523 = vmatpush1.msra.mxu0 0.0
    %1524 = vmatprep.subr.mxu0 0.0
    %1525 = vmatpush1.msra.mxu0 0.0
    %1526 = vmatprep.subr.mxu0 0.0
    %1527 = vmatpush1.msra.mxu0 0.0
    %1528 = vmatprep.subr.mxu0 0.0
    %1529 = vmatpush1.msra.mxu0 0.0
    %1530 = vmatprep.subr.mxu0 0.0
    %1531 = vmatpush1.msra.mxu0 0.0
    %1532 = vmatprep.subr.mxu0 0.0
    %1533 = vmatpush1.msra.mxu0 0.0
    %1534 = vmatprep.subr.mxu0 0.0
    %1535 = vmatpush1.msra.mxu0 0.0
    %1536 = vmatprep.mubr.f32.mxu0 0.0
    %v1537 = vand.u32 %v124, 4294901760
    %1538 = vmatmul.mubr.f32.gmra.mrb[0].mxu0 %v1537
    %v1539 = vpop.f32.mrb[0].mxu0
    %v1540 = vadd.f32 %v1453, %v1539
    %v1541 = vpop.f32.mrb[0].mxu0
    %1542 = vdwg.mxu0
    %v1543 = vmul.f32 %v1540, %v1540
    %v1544 = vld [vmem:[%s3] sm:$0xff]
    %v1545 = vld [vmem:[%s3 + $0x8] sm:$0xff]
    %v1546 = vld [vmem:[%s3 + $0x10] sm:$0xff]
    %v1547 = vld [vmem:[%s3 + $0x18] sm:$0xff]
    %vm1548 = vcmask 261120
    %v1550 = vsel %vm1548, %v1543, 0
    %1552 = vmatprep.subr.mxu0 0.0
    %v1553 = vand.u32 %v1544, 4294901760
    %1554 = vmatpush1.msra.mxu0 %v1553
    %1555 = vmatprep.subr.mxu0 0.0
    %v1556 = vand.u32 %v1545, 4294901760
    %1557 = vmatpush1.msra.mxu0 %v1556
    %1558 = vmatprep.subr.mxu0 0.0
    %v1559 = vand.u32 %v1546, 4294901760
    %1560 = vmatpush1.msra.mxu0 %v1559
    %1561 = vmatprep.subr.mxu0 0.0
    %v1562 = vand.u32 %v1547, 4294901760
    %1563 = vmatpush1.msra.mxu0 %v1562
    %1564 = vmatprep.subr.mxu0 0.0
    %1565 = vmatpush1.msra.mxu0 0.0
    %1566 = vmatprep.subr.mxu0 0.0
    %1567 = vmatpush1.msra.mxu0 0.0
    %1568 = vmatprep.subr.mxu0 0.0
    %1569 = vmatpush1.msra.mxu0 0.0
    %1570 = vmatprep.subr.mxu0 0.0
    %1571 = vmatpush1.msra.mxu0 0.0
    %1572 = vmatprep.subr.mxu0 0.0
    %1573 = vmatpush1.msra.mxu0 0.0
    %1574 = vmatprep.subr.mxu0 0.0
    %1575 = vmatpush1.msra.mxu0 0.0
    %1576 = vmatprep.subr.mxu0 0.0
    %1577 = vmatpush1.msra.mxu0 0.0
    %1578 = vmatprep.subr.mxu0 0.0
    %1579 = vmatpush1.msra.mxu0 0.0
    %1580 = vmatprep.subr.mxu0 0.0
    %1581 = vmatpush1.msra.mxu0 0.0
    %1582 = vmatprep.subr.mxu0 0.0
    %1583 = vmatpush1.msra.mxu0 0.0
    %1584 = vmatprep.subr.mxu0 0.0
    %1585 = vmatpush1.msra.mxu0 0.0
    %1586 = vmatprep.subr.mxu0 0.0
    %1587 = vmatpush1.msra.mxu0 0.0
    %1588 = vmatprep.subr.mxu0 0.0
    %1589 = vmatpush1.msra.mxu0 0.0
    %1590 = vmatprep.subr.mxu0 0.0
    %1591 = vmatpush1.msra.mxu0 0.0
    %1592 = vmatprep.subr.mxu0 0.0
    %1593 = vmatpush1.msra.mxu0 0.0
    %1594 = vmatprep.subr.mxu0 0.0
    %1595 = vmatpush1.msra.mxu0 0.0
    %1596 = vmatprep.subr.mxu0 0.0
    %1597 = vmatpush1.msra.mxu0 0.0
    %1598 = vmatprep.subr.mxu0 0.0
    %1599 = vmatpush1.msra.mxu0 0.0
    %1600 = vmatprep.subr.mxu0 0.0
    %1601 = vmatpush1.msra.mxu0 0.0
    %1602 = vmatprep.subr.mxu0 0.0
    %1603 = vmatpush1.msra.mxu0 0.0
    %1604 = vmatprep.subr.mxu0 0.0
    %1605 = vmatpush1.msra.mxu0 0.0
    %1606 = vmatprep.subr.mxu0 0.0
    %1607 = vmatpush1.msra.mxu0 0.0
    %1608 = vmatprep.subr.mxu0 0.0
    %1609 = vmatpush1.msra.mxu0 0.0
    %1610 = vmatprep.subr.mxu0 0.0
    %1611 = vmatpush1.msra.mxu0 0.0
    %1612 = vmatprep.subr.mxu0 0.0
    %1613 = vmatpush1.msra.mxu0 0.0
    %1614 = vmatprep.subr.mxu0 0.0
    %1615 = vmatpush1.msra.mxu0 0.0
    %1616 = vmatprep.subr.mxu0 0.0
    %1617 = vmatpush1.msra.mxu0 0.0
    %1618 = vmatprep.subr.mxu0 0.0
    %1619 = vmatpush1.msra.mxu0 0.0
    %1620 = vmatprep.mubr.f32.mxu0 0.0
    %v1621 = vand.u32 %v1550, 4294901760
    %v1622 = vsub.f32 %v1550, %v1621
    %v1623 = vand.u32 %v1622, 4294901760
    %v1624 = vsub.f32 %v1622, %v1623
    %v1625 = vand.u32 %v1624, 4294901760
    %1626 = vmatmul.mubr.f32.gmra.mrb[0].mxu0 %v1625
    %v1627 = vpop.f32.mrb[0].mxu0
    %v1628 = vadd.f32 0.0, %v1627
    %v1629 = vpop.f32.mrb[0].mxu0
    %1630 = vdwg.mxu0
    %1631 = vmatprep.subr.mxu0 0.0
    %v1632 = vand.u32 %v1544, 4294901760
    %v1633 = vsub.f32 %v1544, %v1632
    %v1634 = vand.u32 %v1633, 4294901760
    %v1635 = vsub.f32 %v1633, %v1634
    %v1636 = vand.u32 %v1635, 4294901760
    %1637 = vmatpush1.msra.mxu0 %v1636
    %1638 = vmatprep.subr.mxu0 0.0
    %v1639 = vand.u32 %v1545, 4294901760
    %v1640 = vsub.f32 %v1545, %v1639
    %v1641 = vand.u32 %v1640, 4294901760
    %v1642 = vsub.f32 %v1640, %v1641
    %v1643 = vand.u32 %v1642, 4294901760
    %1644 = vmatpush1.msra.mxu0 %v1643
    %1645 = vmatprep.subr.mxu0 0.0
    %v1646 = vand.u32 %v1546, 4294901760
    %v1647 = vsub.f32 %v1546, %v1646
    %v1648 = vand.u32 %v1647, 4294901760
    %v1649 = vsub.f32 %v1647, %v1648
    %v1650 = vand.u32 %v1649, 4294901760
    %1651 = vmatpush1.msra.mxu0 %v1650
    %1652 = vmatprep.subr.mxu0 0.0
    %v1653 = vand.u32 %v1547, 4294901760
    %v1654 = vsub.f32 %v1547, %v1653
    %v1655 = vand.u32 %v1654, 4294901760
    %v1656 = vsub.f32 %v1654, %v1655
    %v1657 = vand.u32 %v1656, 4294901760
    %1658 = vmatpush1.msra.mxu0 %v1657
    %1659 = vmatprep.subr.mxu0 0.0
    %1660 = vmatpush1.msra.mxu0 0.0
    %1661 = vmatprep.subr.mxu0 0.0
    %1662 = vmatpush1.msra.mxu0 0.0
    %1663 = vmatprep.subr.mxu0 0.0
    %1664 = vmatpush1.msra.mxu0 0.0
    %1665 = vmatprep.subr.mxu0 0.0
    %1666 = vmatpush1.msra.mxu0 0.0
    %1667 = vmatprep.subr.mxu0 0.0
    %1668 = vmatpush1.msra.mxu0 0.0
    %1669 = vmatprep.subr.mxu0 0.0
    %1670 = vmatpush1.msra.mxu0 0.0
    %1671 = vmatprep.subr.mxu0 0.0
    %1672 = vmatpush1.msra.mxu0 0.0
    %1673 = vmatprep.subr.mxu0 0.0
    %1674 = vmatpush1.msra.mxu0 0.0
    %1675 = vmatprep.subr.mxu0 0.0
    %1676 = vmatpush1.msra.mxu0 0.0
    %1677 = vmatprep.subr.mxu0 0.0
    %1678 = vmatpush1.msra.mxu0 0.0
    %1679 = vmatprep.subr.mxu0 0.0
    %1680 = vmatpush1.msra.mxu0 0.0
    %1681 = vmatprep.subr.mxu0 0.0
    %1682 = vmatpush1.msra.mxu0 0.0
    %1683 = vmatprep.subr.mxu0 0.0
    %1684 = vmatpush1.msra.mxu0 0.0
    %1685 = vmatprep.subr.mxu0 0.0
    %1686 = vmatpush1.msra.mxu0 0.0
    %1687 = vmatprep.subr.mxu0 0.0
    %1688 = vmatpush1.msra.mxu0 0.0
    %1689 = vmatprep.subr.mxu0 0.0
    %1690 = vmatpush1.msra.mxu0 0.0
    %1691 = vmatprep.subr.mxu0 0.0
    %1692 = vmatpush1.msra.mxu0 0.0
    %1693 = vmatprep.subr.mxu0 0.0
    %1694 = vmatpush1.msra.mxu0 0.0
    %1695 = vmatprep.subr.mxu0 0.0
    %1696 = vmatpush1.msra.mxu0 0.0
    %1697 = vmatprep.subr.mxu0 0.0
    %1698 = vmatpush1.msra.mxu0 0.0
    %1699 = vmatprep.subr.mxu0 0.0
    %1700 = vmatpush1.msra.mxu0 0.0
    %1701 = vmatprep.subr.mxu0 0.0
    %1702 = vmatpush1.msra.mxu0 0.0
    %1703 = vmatprep.subr.mxu0 0.0
    %1704 = vmatpush1.msra.mxu0 0.0
    %1705 = vmatprep.subr.mxu0 0.0
    %1706 = vmatpush1.msra.mxu0 0.0
    %1707 = vmatprep.subr.mxu0 0.0
    %1708 = vmatpush1.msra.mxu0 0.0
    %1709 = vmatprep.subr.mxu0 0.0
    %1710 = vmatpush1.msra.mxu0 0.0
    %1711 = vmatprep.subr.mxu0 0.0
    %1712 = vmatpush1.msra.mxu0 0.0
    %1713 = vmatprep.subr.mxu0 0.0
    %1714 = vmatpush1.msra.mxu0 0.0
    %1715 = vmatprep.mubr.f32.mxu0 0.0
    %v1716 = vand.u32 %v1550, 4294901760
    %1717 = vmatmul.mubr.f32.gmra.mrb[0].mxu0 %v1716
    %v1718 = vpop.f32.mrb[0].mxu0
    %v1719 = vadd.f32 %v1628, %v1718
    %v1720 = vpop.f32.mrb[0].mxu0
    %1721 = vdwg.mxu0
    %1722 = vmatprep.subr.mxu0 0.0
    %v1723 = vand.u32 %v1544, 4294901760
    %v1724 = vsub.f32 %v1544, %v1723
    %1725 = vmatpush1.msra.mxu0 %v1724
    %1726 = vmatprep.subr.mxu0 0.0
    %v1727 = vand.u32 %v1545, 4294901760
    %v1728 = vsub.f32 %v1545, %v1727
    %1729 = vmatpush1.msra.mxu0 %v1728
    %1730 = vmatprep.subr.mxu0 0.0
    %v1731 = vand.u32 %v1546, 4294901760
    %v1732 = vsub.f32 %v1546, %v1731
    %1733 = vmatpush1.msra.mxu0 %v1732
    %1734 = vmatprep.subr.mxu0 0.0
    %v1735 = vand.u32 %v1547, 4294901760
    %v1736 = vsub.f32 %v1547, %v1735
    %1737 = vmatpush1.msra.mxu0 %v1736
    %1738 = vmatprep.subr.mxu0 0.0
    %1739 = vmatpush1.msra.mxu0 0.0
    %1740 = vmatprep.subr.mxu0 0.0
    %1741 = vmatpush1.msra.mxu0 0.0
    %1742 = vmatprep.subr.mxu0 0.0
    %1743 = vmatpush1.msra.mxu0 0.0
    %1744 = vmatprep.subr.mxu0 0.0
    %1745 = vmatpush1.msra.mxu0 0.0
    %1746 = vmatprep.subr.mxu0 0.0
    %1747 = vmatpush1.msra.mxu0 0.0
    %1748 = vmatprep.subr.mxu0 0.0
    %1749 = vmatpush1.msra.mxu0 0.0
    %1750 = vmatprep.subr.mxu0 0.0
    %1751 = vmatpush1.msra.mxu0 0.0
    %1752 = vmatprep.subr.mxu0 0.0
    %1753 = vmatpush1.msra.mxu0 0.0
    %1754 = vmatprep.subr.mxu0 0.0
    %1755 = vmatpush1.msra.mxu0 0.0
    %1756 = vmatprep.subr.mxu0 0.0
    %1757 = vmatpush1.msra.mxu0 0.0
    %1758 = vmatprep.subr.mxu0 0.0
    %1759 = vmatpush1.msra.mxu0 0.0
    %1760 = vmatprep.subr.mxu0 0.0
    %1761 = vmatpush1.msra.mxu0 0.0
    %1762 = vmatprep.subr.mxu0 0.0
    %1763 = vmatpush1.msra.mxu0 0.0
    %1764 = vmatprep.subr.mxu0 0.0
    %1765 = vmatpush1.msra.mxu0 0.0
    %1766 = vmatprep.subr.mxu0 0.0
    %1767 = vmatpush1.msra.mxu0 0.0
    %1768 = vmatprep.subr.mxu0 0.0
    %1769 = vmatpush1.msra.mxu0 0.0
    %1770 = vmatprep.subr.mxu0 0.0
    %1771 = vmatpush1.msra.mxu0 0.0
    %1772 = vmatprep.subr.mxu0 0.0
    %1773 = vmatpush1.msra.mxu0 0.0
    %1774 = vmatprep.subr.mxu0 0.0
    %1775 = vmatpush1.msra.mxu0 0.0
    %1776 = vmatprep.subr.mxu0 0.0
    %1777 = vmatpush1.msra.mxu0 0.0
    %1778 = vmatprep.subr.mxu0 0.0
    %1779 = vmatpush1.msra.mxu0 0.0
    %1780 = vmatprep.subr.mxu0 0.0
    %1781 = vmatpush1.msra.mxu0 0.0
    %1782 = vmatprep.subr.mxu0 0.0
    %1783 = vmatpush1.msra.mxu0 0.0
    %1784 = vmatprep.subr.mxu0 0.0
    %1785 = vmatpush1.msra.mxu0 0.0
    %1786 = vmatprep.subr.mxu0 0.0
    %1787 = vmatpush1.msra.mxu0 0.0
    %1788 = vmatprep.subr.mxu0 0.0
    %1789 = vmatpush1.msra.mxu0 0.0
    %1790 = vmatprep.subr.mxu0 0.0
    %1791 = vmatpush1.msra.mxu0 0.0
    %1792 = vmatprep.subr.mxu0 0.0
    %1793 = vmatpush1.msra.mxu0 0.0
    %1794 = vmatprep.mubr.f32.mxu0 0.0
    %v1795 = vand.u32 %v1550, 4294901760
    %v1796 = vsub.f32 %v1550, %v1795
    %1797 = vmatmul.mubr.f32.gmra.mrb[0].mxu0 %v1796
    %v1798 = vpop.f32.mrb[0].mxu0
    %v1799 = vadd.f32 %v1719, %v1798
    %v1800 = vpop.f32.mrb[0].mxu0
    %1801 = vdwg.mxu0
    %1802 = vmatprep.subr.mxu0 0.0
    %v1803 = vand.u32 %v1544, 4294901760
    %1804 = vmatpush1.msra.mxu0 %v1803
    %1805 = vmatprep.subr.mxu0 0.0
    %v1806 = vand.u32 %v1545, 4294901760
    %1807 = vmatpush1.msra.mxu0 %v1806
    %1808 = vmatprep.subr.mxu0 0.0
    %v1809 = vand.u32 %v1546, 4294901760
    %1810 = vmatpush1.msra.mxu0 %v1809
    %1811 = vmatprep.subr.mxu0 0.0
    %v1812 = vand.u32 %v1547, 4294901760
    %1813 = vmatpush1.msra.mxu0 %v1812
    %1814 = vmatprep.subr.mxu0 0.0
    %1815 = vmatpush1.msra.mxu0 0.0
    %1816 = vmatprep.subr.mxu0 0.0
    %1817 = vmatpush1.msra.mxu0 0.0
    %1818 = vmatprep.subr.mxu0 0.0
    %1819 = vmatpush1.msra.mxu0 0.0
    %1820 = vmatprep.subr.mxu0 0.0
    %1821 = vmatpush1.msra.mxu0 0.0
    %1822 = vmatprep.subr.mxu0 0.0
    %1823 = vmatpush1.msra.mxu0 0.0
    %1824 = vmatprep.subr.mxu0 0.0
    %1825 = vmatpush1.msra.mxu0 0.0
    %1826 = vmatprep.subr.mxu0 0.0
    %1827 = vmatpush1.msra.mxu0 0.0
    %1828 = vmatprep.subr.mxu0 0.0
    %1829 = vmatpush1.msra.mxu0 0.0
    %1830 = vmatprep.subr.mxu0 0.0
    %1831 = vmatpush1.msra.mxu0 0.0
    %1832 = vmatprep.subr.mxu0 0.0
    %1833 = vmatpush1.msra.mxu0 0.0
    %1834 = vmatprep.subr.mxu0 0.0
    %1835 = vmatpush1.msra.mxu0 0.0
    %1836 = vmatprep.subr.mxu0 0.0
    %1837 = vmatpush1.msra.mxu0 0.0
    %1838 = vmatprep.subr.mxu0 0.0
    %1839 = vmatpush1.msra.mxu0 0.0
    %1840 = vmatprep.subr.mxu0 0.0
    %1841 = vmatpush1.msra.mxu0 0.0
    %1842 = vmatprep.subr.mxu0 0.0
    %1843 = vmatpush1.msra.mxu0 0.0
    %1844 = vmatprep.subr.mxu0 0.0
    %1845 = vmatpush1.msra.mxu0 0.0
    %1846 = vmatprep.subr.mxu0 0.0
    %1847 = vmatpush1.msra.mxu0 0.0
    %1848 = vmatprep.subr.mxu0 0.0
    %1849 = vmatpush1.msra.mxu0 0.0
    %1850 = vmatprep.subr.mxu0 0.0
    %1851 = vmatpush1.msra.mxu0 0.0
    %1852 = vmatprep.subr.mxu0 0.0
    %1853 = vmatpush1.msra.mxu0 0.0
    %1854 = vmatprep.subr.mxu0 0.0
    %1855 = vmatpush1.msra.mxu0 0.0
    %1856 = vmatprep.subr.mxu0 0.0
    %1857 = vmatpush1.msra.mxu0 0.0
    %1858 = vmatprep.subr.mxu0 0.0
    %1859 = vmatpush1.msra.mxu0 0.0
    %1860 = vmatprep.subr.mxu0 0.0
    %1861 = vmatpush1.msra.mxu0 0.0
    %1862 = vmatprep.subr.mxu0 0.0
    %1863 = vmatpush1.msra.mxu0 0.0
    %1864 = vmatprep.subr.mxu0 0.0
    %1865 = vmatpush1.msra.mxu0 0.0
    %1866 = vmatprep.subr.mxu0 0.0
    %1867 = vmatpush1.msra.mxu0 0.0
    %1868 = vmatprep.subr.mxu0 0.0
    %1869 = vmatpush1.msra.mxu0 0.0
    %1870 = vmatprep.mubr.f32.mxu0 0.0
    %v1871 = vand.u32 %v1550, 4294901760
    %v1872 = vsub.f32 %v1550, %v1871
    %v1873 = vand.u32 %v1872, 4294901760
    %1874 = vmatmul.mubr.f32.gmra.mrb[0].mxu0 %v1873
    %v1875 = vpop.f32.mrb[0].mxu0
    %v1876 = vadd.f32 %v1799, %v1875
    %v1877 = vpop.f32.mrb[0].mxu0
    %1878 = vdwg.mxu0
    %1879 = vmatprep.subr.mxu0 0.0
    %v1880 = vand.u32 %v1544, 4294901760
    %v1881 = vsub.f32 %v1544, %v1880
    %v1882 = vand.u32 %v1881, 4294901760
    %1883 = vmatpush1.msra.mxu0 %v1882
    %1884 = vmatprep.subr.mxu0 0.0
    %v1885 = vand.u32 %v1545, 4294901760
    %v1886 = vsub.f32 %v1545, %v1885
    %v1887 = vand.u32 %v1886, 4294901760
    %1888 = vmatpush1.msra.mxu0 %v1887
    %1889 = vmatprep.subr.mxu0 0.0
    %v1890 = vand.u32 %v1546, 4294901760
    %v1891 = vsub.f32 %v1546, %v1890
    %v1892 = vand.u32 %v1891, 4294901760
    %1893 = vmatpush1.msra.mxu0 %v1892
    %1894 = vmatprep.subr.mxu0 0.0
    %v1895 = vand.u32 %v1547, 4294901760
    %v1896 = vsub.f32 %v1547, %v1895
    %v1897 = vand.u32 %v1896, 4294901760
    %1898 = vmatpush1.msra.mxu0 %v1897
    %1899 = vmatprep.subr.mxu0 0.0
    %1900 = vmatpush1.msra.mxu0 0.0
    %1901 = vmatprep.subr.mxu0 0.0
    %1902 = vmatpush1.msra.mxu0 0.0
    %1903 = vmatprep.subr.mxu0 0.0
    %1904 = vmatpush1.msra.mxu0 0.0
    %1905 = vmatprep.subr.mxu0 0.0
    %1906 = vmatpush1.msra.mxu0 0.0
    %1907 = vmatprep.subr.mxu0 0.0
    %1908 = vmatpush1.msra.mxu0 0.0
    %1909 = vmatprep.subr.mxu0 0.0
    %1910 = vmatpush1.msra.mxu0 0.0
    %1911 = vmatprep.subr.mxu0 0.0
    %1912 = vmatpush1.msra.mxu0 0.0
    %1913 = vmatprep.subr.mxu0 0.0
    %1914 = vmatpush1.msra.mxu0 0.0
    %1915 = vmatprep.subr.mxu0 0.0
    %1916 = vmatpush1.msra.mxu0 0.0
    %1917 = vmatprep.subr.mxu0 0.0
    %1918 = vmatpush1.msra.mxu0 0.0
    %1919 = vmatprep.subr.mxu0 0.0
    %1920 = vmatpush1.msra.mxu0 0.0
    %1921 = vmatprep.subr.mxu0 0.0
    %1922 = vmatpush1.msra.mxu0 0.0
    %1923 = vmatprep.subr.mxu0 0.0
    %1924 = vmatpush1.msra.mxu0 0.0
    %1925 = vmatprep.subr.mxu0 0.0
    %1926 = vmatpush1.msra.mxu0 0.0
    %1927 = vmatprep.subr.mxu0 0.0
    %1928 = vmatpush1.msra.mxu0 0.0
    %1929 = vmatprep.subr.mxu0 0.0
    %1930 = vmatpush1.msra.mxu0 0.0
    %1931 = vmatprep.subr.mxu0 0.0
    %1932 = vmatpush1.msra.mxu0 0.0
    %1933 = vmatprep.subr.mxu0 0.0
    %1934 = vmatpush1.msra.mxu0 0.0
    %1935 = vmatprep.subr.mxu0 0.0
    %1936 = vmatpush1.msra.mxu0 0.0
    %1937 = vmatprep.subr.mxu0 0.0
    %1938 = vmatpush1.msra.mxu0 0.0
    %1939 = vmatprep.subr.mxu0 0.0
    %1940 = vmatpush1.msra.mxu0 0.0
    %1941 = vmatprep.subr.mxu0 0.0
    %1942 = vmatpush1.msra.mxu0 0.0
    %1943 = vmatprep.subr.mxu0 0.0
    %1944 = vmatpush1.msra.mxu0 0.0
    %1945 = vmatprep.subr.mxu0 0.0
    %1946 = vmatpush1.msra.mxu0 0.0
    %1947 = vmatprep.subr.mxu0 0.0
    %1948 = vmatpush1.msra.mxu0 0.0
    %1949 = vmatprep.subr.mxu0 0.0
    %1950 = vmatpush1.msra.mxu0 0.0
    %1951 = vmatprep.subr.mxu0 0.0
    %1952 = vmatpush1.msra.mxu0 0.0
    %1953 = vmatprep.subr.mxu0 0.0
    %1954 = vmatpush1.msra.mxu0 0.0
    %1955 = vmatprep.mubr.f32.mxu0 0.0
    %v1956 = vand.u32 %v1550, 4294901760
    %1957 = vmatmul.mubr.f32.gmra.mrb[0].mxu0 %v1956
    %v1958 = vpop.f32.mrb[0].mxu0
    %v1959 = vadd.f32 %v1876, %v1958
    %v1960 = vpop.f32.mrb[0].mxu0
    %1961 = vdwg.mxu0
    %1962 = vmatprep.subr.mxu0 0.0
    %v1963 = vand.u32 %v1544, 4294901760
    %1964 = vmatpush1.msra.mxu0 %v1963
    %1965 = vmatprep.subr.mxu0 0.0
    %v1966 = vand.u32 %v1545, 4294901760
    %1967 = vmatpush1.msra.mxu0 %v1966
    %1968 = vmatprep.subr.mxu0 0.0
    %v1969 = vand.u32 %v1546, 4294901760
    %1970 = vmatpush1.msra.mxu0 %v1969
    %1971 = vmatprep.subr.mxu0 0.0
    %v1972 = vand.u32 %v1547, 4294901760
    %1973 = vmatpush1.msra.mxu0 %v1972
    %1974 = vmatprep.subr.mxu0 0.0
    %1975 = vmatpush1.msra.mxu0 0.0
    %1976 = vmatprep.subr.mxu0 0.0
    %1977 = vmatpush1.msra.mxu0 0.0
    %1978 = vmatprep.subr.mxu0 0.0
    %1979 = vmatpush1.msra.mxu0 0.0
    %1980 = vmatprep.subr.mxu0 0.0
    %1981 = vmatpush1.msra.mxu0 0.0
    %1982 = vmatprep.subr.mxu0 0.0
    %1983 = vmatpush1.msra.mxu0 0.0
    %1984 = vmatprep.subr.mxu0 0.0
    %1985 = vmatpush1.msra.mxu0 0.0
    %1986 = vmatprep.subr.mxu0 0.0
    %1987 = vmatpush1.msra.mxu0 0.0
    %1988 = vmatprep.subr.mxu0 0.0
    %1989 = vmatpush1.msra.mxu0 0.0
    %1990 = vmatprep.subr.mxu0 0.0
    %1991 = vmatpush1.msra.mxu0 0.0
    %1992 = vmatprep.subr.mxu0 0.0
    %1993 = vmatpush1.msra.mxu0 0.0
    %1994 = vmatprep.subr.mxu0 0.0
    %1995 = vmatpush1.msra.mxu0 0.0
    %1996 = vmatprep.subr.mxu0 0.0
    %1997 = vmatpush1.msra.mxu0 0.0
    %1998 = vmatprep.subr.mxu0 0.0
    %1999 = vmatpush1.msra.mxu0 0.0
    %2000 = vmatprep.subr.mxu0 0.0
    %2001 = vmatpush1.msra.mxu0 0.0
    %2002 = vmatprep.subr.mxu0 0.0
    %2003 = vmatpush1.msra.mxu0 0.0
    %2004 = vmatprep.subr.mxu0 0.0
    %2005 = vmatpush1.msra.mxu0 0.0
    %2006 = vmatprep.subr.mxu0 0.0
    %2007 = vmatpush1.msra.mxu0 0.0
    %2008 = vmatprep.subr.mxu0 0.0
    %2009 = vmatpush1.msra.mxu0 0.0
    %2010 = vmatprep.subr.mxu0 0.0
    %2011 = vmatpush1.msra.mxu0 0.0
    %2012 = vmatprep.subr.mxu0 0.0
    %2013 = vmatpush1.msra.mxu0 0.0
    %2014 = vmatprep.subr.mxu0 0.0
    %2015 = vmatpush1.msra.mxu0 0.0
    %2016 = vmatprep.subr.mxu0 0.0
    %2017 = vmatpush1.msra.mxu0 0.0
    %2018 = vmatprep.subr.mxu0 0.0
    %2019 = vmatpush1.msra.mxu0 0.0
    %2020 = vmatprep.subr.mxu0 0.0
    %2021 = vmatpush1.msra.mxu0 0.0
    %2022 = vmatprep.subr.mxu0 0.0
    %2023 = vmatpush1.msra.mxu0 0.0
    %2024 = vmatprep.subr.mxu0 0.0
    %2025 = vmatpush1.msra.mxu0 0.0
    %2026 = vmatprep.subr.mxu0 0.0
    %2027 = vmatpush1.msra.mxu0 0.0
    %2028 = vmatprep.subr.mxu0 0.0
    %2029 = vmatpush1.msra.mxu0 0.0
    %2030 = vmatprep.mubr.f32.mxu0 0.0
    %v2031 = vand.u32 %v1550, 4294901760
    %2032 = vmatmul.mubr.f32.gmra.mrb[0].mxu0 %v2031
    %v2033 = vpop.f32.mrb[0].mxu0
    %v2034 = vadd.f32 %v1959, %v2033
    %v2035 = vpop.f32.mrb[0].mxu0
    %2036 = vdwg.mxu0
    %v2037 = vld [vmem:[%s4] sm:$0xff]
    %v2038 = vld [vmem:[%s4 + $0x8] sm:$0xff]
    %v2039 = vld [vmem:[%s4 + $0x10] sm:$0xff]
    %v2040 = vld [vmem:[%s4 + $0x18] sm:$0xff]
    %2041 = vmatprep.subr.mxu0 0.0
    %v2042 = vand.u32 %v2037, 4294901760
    %2043 = vmatpush1.msra.mxu0 %v2042
    %2044 = vmatprep.subr.mxu0 0.0
    %v2045 = vand.u32 %v2038, 4294901760
    %2046 = vmatpush1.msra.mxu0 %v2045
    %2047 = vmatprep.subr.mxu0 0.0
    %v2048 = vand.u32 %v2039, 4294901760
    %2049 = vmatpush1.msra.mxu0 %v2048
    %2050 = vmatprep.subr.mxu0 0.0
    %v2051 = vand.u32 %v2040, 4294901760
    %2052 = vmatpush1.msra.mxu0 %v2051
    %2053 = vmatprep.subr.mxu0 0.0
    %2054 = vmatpush1.msra.mxu0 0.0
    %2055 = vmatprep.subr.mxu0 0.0
    %2056 = vmatpush1.msra.mxu0 0.0
    %2057 = vmatprep.subr.mxu0 0.0
    %2058 = vmatpush1.msra.mxu0 0.0
    %2059 = vmatprep.subr.mxu0 0.0
    %2060 = vmatpush1.msra.mxu0 0.0
    %2061 = vmatprep.subr.mxu0 0.0
    %2062 = vmatpush1.msra.mxu0 0.0
    %2063 = vmatprep.subr.mxu0 0.0
    %2064 = vmatpush1.msra.mxu0 0.0
    %2065 = vmatprep.subr.mxu0 0.0
    %2066 = vmatpush1.msra.mxu0 0.0
    %2067 = vmatprep.subr.mxu0 0.0
    %2068 = vmatpush1.msra.mxu0 0.0
    %2069 = vmatprep.subr.mxu0 0.0
    %2070 = vmatpush1.msra.mxu0 0.0
    %2071 = vmatprep.subr.mxu0 0.0
    %2072 = vmatpush1.msra.mxu0 0.0
    %2073 = vmatprep.subr.mxu0 0.0
    %2074 = vmatpush1.msra.mxu0 0.0
    %2075 = vmatprep.subr.mxu0 0.0
    %2076 = vmatpush1.msra.mxu0 0.0
    %2077 = vmatprep.subr.mxu0 0.0
    %2078 = vmatpush1.msra.mxu0 0.0
    %2079 = vmatprep.subr.mxu0 0.0
    %2080 = vmatpush1.msra.mxu0 0.0
    %2081 = vmatprep.subr.mxu0 0.0
    %2082 = vmatpush1.msra.mxu0 0.0
    %2083 = vmatprep.subr.mxu0 0.0
    %2084 = vmatpush1.msra.mxu0 0.0
    %2085 = vmatprep.subr.mxu0 0.0
    %2086 = vmatpush1.msra.mxu0 0.0
    %2087 = vmatprep.subr.mxu0 0.0
    %2088 = vmatpush1.msra.mxu0 0.0
    %2089 = vmatprep.subr.mxu0 0.0
    %2090 = vmatpush1.msra.mxu0 0.0
    %2091 = vmatprep.subr.mxu0 0.0
    %2092 = vmatpush1.msra.mxu0 0.0
    %2093 = vmatprep.subr.mxu0 0.0
    %2094 = vmatpush1.msra.mxu0 0.0
    %2095 = vmatprep.subr.mxu0 0.0
    %2096 = vmatpush1.msra.mxu0 0.0
    %2097 = vmatprep.subr.mxu0 0.0
    %2098 = vmatpush1.msra.mxu0 0.0
    %2099 = vmatprep.subr.mxu0 0.0
    %2100 = vmatpush1.msra.mxu0 0.0
    %2101 = vmatprep.subr.mxu0 0.0
    %2102 = vmatpush1.msra.mxu0 0.0
    %2103 = vmatprep.subr.mxu0 0.0
    %2104 = vmatpush1.msra.mxu0 0.0
    %2105 = vmatprep.subr.mxu0 0.0
    %2106 = vmatpush1.msra.mxu0 0.0
    %2107 = vmatprep.subr.mxu0 0.0
    %2108 = vmatpush1.msra.mxu0 0.0
    %2109 = vmatprep.mubr.f32.mxu0 0.0
    %v2110 = vand.u32 %v1550, 4294901760
    %v2111 = vsub.f32 %v1550, %v2110
    %v2112 = vand.u32 %v2111, 4294901760
    %v2113 = vsub.f32 %v2111, %v2112
    %v2114 = vand.u32 %v2113, 4294901760
    %2115 = vmatmul.mubr.f32.gmra.mrb[0].mxu0 %v2114
    %v2116 = vpop.f32.mrb[0].mxu0
    %v2117 = vadd.f32 0.0, %v2116
    %v2118 = vpop.f32.mrb[0].mxu0
    %2119 = vdwg.mxu0
    %2120 = vmatprep.subr.mxu0 0.0
    %v2121 = vand.u32 %v2037, 4294901760
    %v2122 = vsub.f32 %v2037, %v2121
    %v2123 = vand.u32 %v2122, 4294901760
    %v2124 = vsub.f32 %v2122, %v2123
    %v2125 = vand.u32 %v2124, 4294901760
    %2126 = vmatpush1.msra.mxu0 %v2125
    %2127 = vmatprep.subr.mxu0 0.0
    %v2128 = vand.u32 %v2038, 4294901760
    %v2129 = vsub.f32 %v2038, %v2128
    %v2130 = vand.u32 %v2129, 4294901760
    %v2131 = vsub.f32 %v2129, %v2130
    %v2132 = vand.u32 %v2131, 4294901760
    %2133 = vmatpush1.msra.mxu0 %v2132
    %2134 = vmatprep.subr.mxu0 0.0
    %v2135 = vand.u32 %v2039, 4294901760
    %v2136 = vsub.f32 %v2039, %v2135
    %v2137 = vand.u32 %v2136, 4294901760
    %v2138 = vsub.f32 %v2136, %v2137
    %v2139 = vand.u32 %v2138, 4294901760
    %2140 = vmatpush1.msra.mxu0 %v2139
    %2141 = vmatprep.subr.mxu0 0.0
    %v2142 = vand.u32 %v2040, 4294901760
    %v2143 = vsub.f32 %v2040, %v2142
    %v2144 = vand.u32 %v2143, 4294901760
    %v2145 = vsub.f32 %v2143, %v2144
    %v2146 = vand.u32 %v2145, 4294901760
    %2147 = vmatpush1.msra.mxu0 %v2146
    %2148 = vmatprep.subr.mxu0 0.0
    %2149 = vmatpush1.msra.mxu0 0.0
    %2150 = vmatprep.subr.mxu0 0.0
    %2151 = vmatpush1.msra.mxu0 0.0
    %2152 = vmatprep.subr.mxu0 0.0
    %2153 = vmatpush1.msra.mxu0 0.0
    %2154 = vmatprep.subr.mxu0 0.0
    %2155 = vmatpush1.msra.mxu0 0.0
    %2156 = vmatprep.subr.mxu0 0.0
    %2157 = vmatpush1.msra.mxu0 0.0
    %2158 = vmatprep.subr.mxu0 0.0
    %2159 = vmatpush1.msra.mxu0 0.0
    %2160 = vmatprep.subr.mxu0 0.0
    %2161 = vmatpush1.msra.mxu0 0.0
    %2162 = vmatprep.subr.mxu0 0.0
    %2163 = vmatpush1.msra.mxu0 0.0
    %2164 = vmatprep.subr.mxu0 0.0
    %2165 = vmatpush1.msra.mxu0 0.0
    %2166 = vmatprep.subr.mxu0 0.0
    %2167 = vmatpush1.msra.mxu0 0.0
    %2168 = vmatprep.subr.mxu0 0.0
    %2169 = vmatpush1.msra.mxu0 0.0
    %2170 = vmatprep.subr.mxu0 0.0
    %2171 = vmatpush1.msra.mxu0 0.0
    %2172 = vmatprep.subr.mxu0 0.0
    %2173 = vmatpush1.msra.mxu0 0.0
    %2174 = vmatprep.subr.mxu0 0.0
    %2175 = vmatpush1.msra.mxu0 0.0
    %2176 = vmatprep.subr.mxu0 0.0
    %2177 = vmatpush1.msra.mxu0 0.0
    %2178 = vmatprep.subr.mxu0 0.0
    %2179 = vmatpush1.msra.mxu0 0.0
    %2180 = vmatprep.subr.mxu0 0.0
    %2181 = vmatpush1.msra.mxu0 0.0
    %2182 = vmatprep.subr.mxu0 0.0
    %2183 = vmatpush1.msra.mxu0 0.0
    %2184 = vmatprep.subr.mxu0 0.0
    %2185 = vmatpush1.msra.mxu0 0.0
    %2186 = vmatprep.subr.mxu0 0.0
    %2187 = vmatpush1.msra.mxu0 0.0
    %2188 = vmatprep.subr.mxu0 0.0
    %2189 = vmatpush1.msra.mxu0 0.0
    %2190 = vmatprep.subr.mxu0 0.0
    %2191 = vmatpush1.msra.mxu0 0.0
    %2192 = vmatprep.subr.mxu0 0.0
    %2193 = vmatpush1.msra.mxu0 0.0
    %2194 = vmatprep.subr.mxu0 0.0
    %2195 = vmatpush1.msra.mxu0 0.0
    %2196 = vmatprep.subr.mxu0 0.0
    %2197 = vmatpush1.msra.mxu0 0.0
    %2198 = vmatprep.subr.mxu0 0.0
    %2199 = vmatpush1.msra.mxu0 0.0
    %2200 = vmatprep.subr.mxu0 0.0
    %2201 = vmatpush1.msra.mxu0 0.0
    %2202 = vmatprep.subr.mxu0 0.0
    %2203 = vmatpush1.msra.mxu0 0.0
    %2204 = vmatprep.mubr.f32.mxu0 0.0
    %v2205 = vand.u32 %v1550, 4294901760
    %2206 = vmatmul.mubr.f32.gmra.mrb[0].mxu0 %v2205
    %v2207 = vpop.f32.mrb[0].mxu0
    %v2208 = vadd.f32 %v2117, %v2207
    %v2209 = vpop.f32.mrb[0].mxu0
    %2210 = vdwg.mxu0
    %2211 = vmatprep.subr.mxu0 0.0
    %v2212 = vand.u32 %v2037, 4294901760
    %v2213 = vsub.f32 %v2037, %v2212
    %2214 = vmatpush1.msra.mxu0 %v2213
    %2215 = vmatprep.subr.mxu0 0.0
    %v2216 = vand.u32 %v2038, 4294901760
    %v2217 = vsub.f32 %v2038, %v2216
    %2218 = vmatpush1.msra.mxu0 %v2217
    %2219 = vmatprep.subr.mxu0 0.0
    %v2220 = vand.u32 %v2039, 4294901760
    %v2221 = vsub.f32 %v2039, %v2220
    %2222 = vmatpush1.msra.mxu0 %v2221
    %2223 = vmatprep.subr.mxu0 0.0
    %v2224 = vand.u32 %v2040, 4294901760
    %v2225 = vsub.f32 %v2040, %v2224
    %2226 = vmatpush1.msra.mxu0 %v2225
    %2227 = vmatprep.subr.mxu0 0.0
    %2228 = vmatpush1.msra.mxu0 0.0
    %2229 = vmatprep.subr.mxu0 0.0
    %2230 = vmatpush1.msra.mxu0 0.0
    %2231 = vmatprep.subr.mxu0 0.0
    %2232 = vmatpush1.msra.mxu0 0.0
    %2233 = vmatprep.subr.mxu0 0.0
    %2234 = vmatpush1.msra.mxu0 0.0
    %2235 = vmatprep.subr.mxu0 0.0
    %2236 = vmatpush1.msra.mxu0 0.0
    %2237 = vmatprep.subr.mxu0 0.0
    %2238 = vmatpush1.msra.mxu0 0.0
    %2239 = vmatprep.subr.mxu0 0.0
    %2240 = vmatpush1.msra.mxu0 0.0
    %2241 = vmatprep.subr.mxu0 0.0
    %2242 = vmatpush1.msra.mxu0 0.0
    %2243 = vmatprep.subr.mxu0 0.0
    %2244 = vmatpush1.msra.mxu0 0.0
    %2245 = vmatprep.subr.mxu0 0.0
    %2246 = vmatpush1.msra.mxu0 0.0
    %2247 = vmatprep.subr.mxu0 0.0
    %2248 = vmatpush1.msra.mxu0 0.0
    %2249 = vmatprep.subr.mxu0 0.0
    %2250 = vmatpush1.msra.mxu0 0.0
    %2251 = vmatprep.subr.mxu0 0.0
    %2252 = vmatpush1.msra.mxu0 0.0
    %2253 = vmatprep.subr.mxu0 0.0
    %2254 = vmatpush1.msra.mxu0 0.0
    %2255 = vmatprep.subr.mxu0 0.0
    %2256 = vmatpush1.msra.mxu0 0.0
    %2257 = vmatprep.subr.mxu0 0.0
    %2258 = vmatpush1.msra.mxu0 0.0
    %2259 = vmatprep.subr.mxu0 0.0
    %2260 = vmatpush1.msra.mxu0 0.0
    %2261 = vmatprep.subr.mxu0 0.0
    %2262 = vmatpush1.msra.mxu0 0.0
    %2263 = vmatprep.subr.mxu0 0.0
    %2264 = vmatpush1.msra.mxu0 0.0
    %2265 = vmatprep.subr.mxu0 0.0
    %2266 = vmatpush1.msra.mxu0 0.0
    %2267 = vmatprep.subr.mxu0 0.0
    %2268 = vmatpush1.msra.mxu0 0.0
    %2269 = vmatprep.subr.mxu0 0.0
    %2270 = vmatpush1.msra.mxu0 0.0
    %2271 = vmatprep.subr.mxu0 0.0
    %2272 = vmatpush1.msra.mxu0 0.0
    %2273 = vmatprep.subr.mxu0 0.0
    %2274 = vmatpush1.msra.mxu0 0.0
    %2275 = vmatprep.subr.mxu0 0.0
    %2276 = vmatpush1.msra.mxu0 0.0
    %2277 = vmatprep.subr.mxu0 0.0
    %2278 = vmatpush1.msra.mxu0 0.0
    %2279 = vmatprep.subr.mxu0 0.0
    %2280 = vmatpush1.msra.mxu0 0.0
    %2281 = vmatprep.subr.mxu0 0.0
    %2282 = vmatpush1.msra.mxu0 0.0
    %2283 = vmatprep.mubr.f32.mxu0 0.0
    %v2284 = vand.u32 %v1550, 4294901760
    %v2285 = vsub.f32 %v1550, %v2284
    %2286 = vmatmul.mubr.f32.gmra.mrb[0].mxu0 %v2285
    %v2287 = vpop.f32.mrb[0].mxu0
    %v2288 = vadd.f32 %v2208, %v2287
    %v2289 = vpop.f32.mrb[0].mxu0
    %2290 = vdwg.mxu0
    %2291 = vmatprep.subr.mxu0 0.0
    %v2292 = vand.u32 %v2037, 4294901760
    %2293 = vmatpush1.msra.mxu0 %v2292
    %2294 = vmatprep.subr.mxu0 0.0
    %v2295 = vand.u32 %v2038, 4294901760
    %2296 = vmatpush1.msra.mxu0 %v2295
    %2297 = vmatprep.subr.mxu0 0.0
    %v2298 = vand.u32 %v2039, 4294901760
    %2299 = vmatpush1.msra.mxu0 %v2298
    %2300 = vmatprep.subr.mxu0 0.0
    %v2301 = vand.u32 %v2040, 4294901760
    %2302 = vmatpush1.msra.mxu0 %v2301
    %2303 = vmatprep.subr.mxu0 0.0
    %2304 = vmatpush1.msra.mxu0 0.0
    %2305 = vmatprep.subr.mxu0 0.0
    %2306 = vmatpush1.msra.mxu0 0.0
    %2307 = vmatprep.subr.mxu0 0.0
    %2308 = vmatpush1.msra.mxu0 0.0
    %2309 = vmatprep.subr.mxu0 0.0
    %2310 = vmatpush1.msra.mxu0 0.0
    %2311 = vmatprep.subr.mxu0 0.0
    %2312 = vmatpush1.msra.mxu0 0.0
    %2313 = vmatprep.subr.mxu0 0.0
    %2314 = vmatpush1.msra.mxu0 0.0
    %2315 = vmatprep.subr.mxu0 0.0
    %2316 = vmatpush1.msra.mxu0 0.0
    %2317 = vmatprep.subr.mxu0 0.0
    %2318 = vmatpush1.msra.mxu0 0.0
    %2319 = vmatprep.subr.mxu0 0.0
    %2320 = vmatpush1.msra.mxu0 0.0
    %2321 = vmatprep.subr.mxu0 0.0
    %2322 = vmatpush1.msra.mxu0 0.0
    %2323 = vmatprep.subr.mxu0 0.0
    %2324 = vmatpush1.msra.mxu0 0.0
    %2325 = vmatprep.subr.mxu0 0.0
    %2326 = vmatpush1.msra.mxu0 0.0
    %2327 = vmatprep.subr.mxu0 0.0
    %2328 = vmatpush1.msra.mxu0 0.0
    %2329 = vmatprep.subr.mxu0 0.0
    %2330 = vmatpush1.msra.mxu0 0.0
    %2331 = vmatprep.subr.mxu0 0.0
    %2332 = vmatpush1.msra.mxu0 0.0
    %2333 = vmatprep.subr.mxu0 0.0
    %2334 = vmatpush1.msra.mxu0 0.0
    %2335 = vmatprep.subr.mxu0 0.0
    %2336 = vmatpush1.msra.mxu0 0.0
    %2337 = vmatprep.subr.mxu0 0.0
    %2338 = vmatpush1.msra.mxu0 0.0
    %2339 = vmatprep.subr.mxu0 0.0
    %2340 = vmatpush1.msra.mxu0 0.0
    %2341 = vmatprep.subr.mxu0 0.0
    %2342 = vmatpush1.msra.mxu0 0.0
    %2343 = vmatprep.subr.mxu0 0.0
    %2344 = vmatpush1.msra.mxu0 0.0
    %2345 = vmatprep.subr.mxu0 0.0
    %2346 = vmatpush1.msra.mxu0 0.0
    %2347 = vmatprep.subr.mxu0 0.0
    %2348 = vmatpush1.msra.mxu0 0.0
    %2349 = vmatprep.subr.mxu0 0.0
    %2350 = vmatpush1.msra.mxu0 0.0
    %2351 = vmatprep.subr.mxu0 0.0
    %2352 = vmatpush1.msra.mxu0 0.0
    %2353 = vmatprep.subr.mxu0 0.0
    %2354 = vmatpush1.msra.mxu0 0.0
    %2355 = vmatprep.subr.mxu0 0.0
    %2356 = vmatpush1.msra.mxu0 0.0
    %2357 = vmatprep.subr.mxu0 0.0
    %2358 = vmatpush1.msra.mxu0 0.0
    %2359 = vmatprep.mubr.f32.mxu0 0.0
    %v2360 = vand.u32 %v1550, 4294901760
    %v2361 = vsub.f32 %v1550, %v2360
    %v2362 = vand.u32 %v2361, 4294901760
    %2363 = vmatmul.mubr.f32.gmra.mrb[0].mxu0 %v2362
    %v2364 = vpop.f32.mrb[0].mxu0
    %v2365 = vadd.f32 %v2288, %v2364
    %v2366 = vpop.f32.mrb[0].mxu0
    %2367 = vdwg.mxu0
    %2368 = vmatprep.subr.mxu0 0.0
    %v2369 = vand.u32 %v2037, 4294901760
    %v2370 = vsub.f32 %v2037, %v2369
    %v2371 = vand.u32 %v2370, 4294901760
    %2372 = vmatpush1.msra.mxu0 %v2371
    %2373 = vmatprep.subr.mxu0 0.0
    %v2374 = vand.u32 %v2038, 4294901760
    %v2375 = vsub.f32 %v2038, %v2374
    %v2376 = vand.u32 %v2375, 4294901760
    %2377 = vmatpush1.msra.mxu0 %v2376
    %2378 = vmatprep.subr.mxu0 0.0
    %v2379 = vand.u32 %v2039, 4294901760
    %v2380 = vsub.f32 %v2039, %v2379
    %v2381 = vand.u32 %v2380, 4294901760
    %2382 = vmatpush1.msra.mxu0 %v2381
    %2383 = vmatprep.subr.mxu0 0.0
    %v2384 = vand.u32 %v2040, 4294901760
    %v2385 = vsub.f32 %v2040, %v2384
    %v2386 = vand.u32 %v2385, 4294901760
    %2387 = vmatpush1.msra.mxu0 %v2386
    %2388 = vmatprep.subr.mxu0 0.0
    %2389 = vmatpush1.msra.mxu0 0.0
    %2390 = vmatprep.subr.mxu0 0.0
    %2391 = vmatpush1.msra.mxu0 0.0
    %2392 = vmatprep.subr.mxu0 0.0
    %2393 = vmatpush1.msra.mxu0 0.0
    %2394 = vmatprep.subr.mxu0 0.0
    %2395 = vmatpush1.msra.mxu0 0.0
    %2396 = vmatprep.subr.mxu0 0.0
    %2397 = vmatpush1.msra.mxu0 0.0
    %2398 = vmatprep.subr.mxu0 0.0
    %2399 = vmatpush1.msra.mxu0 0.0
    %2400 = vmatprep.subr.mxu0 0.0
    %2401 = vmatpush1.msra.mxu0 0.0
    %2402 = vmatprep.subr.mxu0 0.0
    %2403 = vmatpush1.msra.mxu0 0.0
    %2404 = vmatprep.subr.mxu0 0.0
    %2405 = vmatpush1.msra.mxu0 0.0
    %2406 = vmatprep.subr.mxu0 0.0
    %2407 = vmatpush1.msra.mxu0 0.0
    %2408 = vmatprep.subr.mxu0 0.0
    %2409 = vmatpush1.msra.mxu0 0.0
    %2410 = vmatprep.subr.mxu0 0.0
    %2411 = vmatpush1.msra.mxu0 0.0
    %2412 = vmatprep.subr.mxu0 0.0
    %2413 = vmatpush1.msra.mxu0 0.0
    %2414 = vmatprep.subr.mxu0 0.0
    %2415 = vmatpush1.msra.mxu0 0.0
    %2416 = vmatprep.subr.mxu0 0.0
    %2417 = vmatpush1.msra.mxu0 0.0
    %2418 = vmatprep.subr.mxu0 0.0
    %2419 = vmatpush1.msra.mxu0 0.0
    %2420 = vmatprep.subr.mxu0 0.0
    %2421 = vmatpush1.msra.mxu0 0.0
    %2422 = vmatprep.subr.mxu0 0.0
    %2423 = vmatpush1.msra.mxu0 0.0
    %2424 = vmatprep.subr.mxu0 0.0
    %2425 = vmatpush1.msra.mxu0 0.0
    %2426 = vmatprep.subr.mxu0 0.0
    %2427 = vmatpush1.msra.mxu0 0.0
    %2428 = vmatprep.subr.mxu0 0.0
    %2429 = vmatpush1.msra.mxu0 0.0
    %2430 = vmatprep.subr.mxu0 0.0
    %2431 = vmatpush1.msra.mxu0 0.0
    %2432 = vmatprep.subr.mxu0 0.0
    %2433 = vmatpush1.msra.mxu0 0.0
    %2434 = vmatprep.subr.mxu0 0.0
    %2435 = vmatpush1.msra.mxu0 0.0
    %2436 = vmatprep.subr.mxu0 0.0
    %2437 = vmatpush1.msra.mxu0 0.0
    %2438 = vmatprep.subr.mxu0 0.0
    %2439 = vmatpush1.msra.mxu0 0.0
    %2440 = vmatprep.subr.mxu0 0.0
    %2441 = vmatpush1.msra.mxu0 0.0
    %2442 = vmatprep.subr.mxu0 0.0
    %2443 = vmatpush1.msra.mxu0 0.0
    %2444 = vmatprep.mubr.f32.mxu0 0.0
    %v2445 = vand.u32 %v1550, 4294901760
    %2446 = vmatmul.mubr.f32.gmra.mrb[0].mxu0 %v2445
    %v2447 = vpop.f32.mrb[0].mxu0
    %v2448 = vadd.f32 %v2365, %v2447
    %v2449 = vpop.f32.mrb[0].mxu0
    %2450 = vdwg.mxu0
    %2451 = vmatprep.subr.mxu0 0.0
    %v2452 = vand.u32 %v2037, 4294901760
    %2453 = vmatpush1.msra.mxu0 %v2452
    %2454 = vmatprep.subr.mxu0 0.0
    %v2455 = vand.u32 %v2038, 4294901760
    %2456 = vmatpush1.msra.mxu0 %v2455
    %2457 = vmatprep.subr.mxu0 0.0
    %v2458 = vand.u32 %v2039, 4294901760
    %2459 = vmatpush1.msra.mxu0 %v2458
    %2460 = vmatprep.subr.mxu0 0.0
    %v2461 = vand.u32 %v2040, 4294901760
    %2462 = vmatpush1.msra.mxu0 %v2461
    %2463 = vmatprep.subr.mxu0 0.0
    %2464 = vmatpush1.msra.mxu0 0.0
    %2465 = vmatprep.subr.mxu0 0.0
    %2466 = vmatpush1.msra.mxu0 0.0
    %2467 = vmatprep.subr.mxu0 0.0
    %2468 = vmatpush1.msra.mxu0 0.0
    %2469 = vmatprep.subr.mxu0 0.0
    %2470 = vmatpush1.msra.mxu0 0.0
    %2471 = vmatprep.subr.mxu0 0.0
    %2472 = vmatpush1.msra.mxu0 0.0
    %2473 = vmatprep.subr.mxu0 0.0
    %2474 = vmatpush1.msra.mxu0 0.0
    %2475 = vmatprep.subr.mxu0 0.0
    %2476 = vmatpush1.msra.mxu0 0.0
    %2477 = vmatprep.subr.mxu0 0.0
    %2478 = vmatpush1.msra.mxu0 0.0
    %2479 = vmatprep.subr.mxu0 0.0
    %2480 = vmatpush1.msra.mxu0 0.0
    %2481 = vmatprep.subr.mxu0 0.0
    %2482 = vmatpush1.msra.mxu0 0.0
    %2483 = vmatprep.subr.mxu0 0.0
    %2484 = vmatpush1.msra.mxu0 0.0
    %2485 = vmatprep.subr.mxu0 0.0
    %2486 = vmatpush1.msra.mxu0 0.0
    %2487 = vmatprep.subr.mxu0 0.0
    %2488 = vmatpush1.msra.mxu0 0.0
    %2489 = vmatprep.subr.mxu0 0.0
    %2490 = vmatpush1.msra.mxu0 0.0
    %2491 = vmatprep.subr.mxu0 0.0
    %2492 = vmatpush1.msra.mxu0 0.0
    %2493 = vmatprep.subr.mxu0 0.0
    %2494 = vmatpush1.msra.mxu0 0.0
    %2495 = vmatprep.subr.mxu0 0.0
    %2496 = vmatpush1.msra.mxu0 0.0
    %2497 = vmatprep.subr.mxu0 0.0
    %2498 = vmatpush1.msra.mxu0 0.0
    %2499 = vmatprep.subr.mxu0 0.0
    %2500 = vmatpush1.msra.mxu0 0.0
    %2501 = vmatprep.subr.mxu0 0.0
    %2502 = vmatpush1.msra.mxu0 0.0
    %2503 = vmatprep.subr.mxu0 0.0
    %2504 = vmatpush1.msra.mxu0 0.0
    %2505 = vmatprep.subr.mxu0 0.0
    %2506 = vmatpush1.msra.mxu0 0.0
    %2507 = vmatprep.subr.mxu0 0.0
    %2508 = vmatpush1.msra.mxu0 0.0
    %2509 = vmatprep.subr.mxu0 0.0
    %2510 = vmatpush1.msra.mxu0 0.0
    %2511 = vmatprep.subr.mxu0 0.0
    %2512 = vmatpush1.msra.mxu0 0.0
    %2513 = vmatprep.subr.mxu0 0.0
    %2514 = vmatpush1.msra.mxu0 0.0
    %2515 = vmatprep.subr.mxu0 0.0
    %2516 = vmatpush1.msra.mxu0 0.0
    %2517 = vmatprep.subr.mxu0 0.0
    %2518 = vmatpush1.msra.mxu0 0.0
    %2519 = vmatprep.mubr.f32.mxu0 0.0
    %v2520 = vand.u32 %v1550, 4294901760
    %2521 = vmatmul.mubr.f32.gmra.mrb[0].mxu0 %v2520
    %v2522 = vpop.f32.mrb[0].mxu0
    %v2523 = vadd.f32 %v2448, %v2522
    %v2524 = vpop.f32.mrb[0].mxu0
    %2525 = vdwg.mxu0
    %v2526 = vrcp.pop %v2034
    %v2527 = vmul.f32 %v2523, %v2526
    %v2528 = vlog2.pop %v2527
    %v2529 = vmul.f32 %v2528, 0.6931472
    %v2530 = vmul.f32 %v2529, 4.3429446
    %vm2531 = vcmask 25600
    %2532 = vst.msk [vmem:[#allocation2] sm:$0x3] %vm2531, %v2530
    // Predicated region
    $region22: #{tpu_custom_call.1} parent=1 // pred_check
      _
    $region23: #{tpu_custom_call.1} parent=1 // pred_check_branch
      %2534 = sbr.rel (0) target = $region25
    $region24: #{tpu_custom_call.1} parent=1 // pred_region
      %s2536 = ssub.s32 32, 32
      %2537 = vsyncadd [#allocation3], %s2536
      %s2539 = sshll.u32 [#allocation2], 4
      %s2540 = int_to_ptr.vmem [resolvable:$true] %s2539
      %2542 = dma.vmem_to_hbm [thread:$0]  %s2540, 32, %s5, [#allocation3]
    $region25: #{tpu_custom_call.1} parent=1 // pred_fallthru
      _
    // Predicated region
    $region26: #{tpu_custom_call.1} parent=1 // pred_check
      _
    $region27: #{tpu_custom_call.1} parent=1 // pred_check_branch
      %2544 = sbr.rel (0) target = $region29
    $region28: #{tpu_custom_call.1} parent=1 // pred_region
      %2545 = dma.done [#allocation3], 32
    $region29: #{tpu_custom_call.1} parent=1 // pred_fallthru
      _
    %2546 = vsyncpa [#allocation3], 1

</llo_original>
